<compile_context>
chip_gen: v5e
topology: v5e:2x2
jax: 0.10.0
libtpu: 0.0.40
codegen_flags: <defaults>
</compile_context>

<pallas_src>
import functools

import jax
import jax.numpy as jnp
from jax.experimental import pallas as pl
from jax.experimental.pallas import tpu as pltpu

LANES = 128
VMEM_BUDGET_BYTES = 40 * 1024 * 1024        # fits v7x's 64 MiB physical VMEM
VMEM_LIMIT_BYTES = 48 * 1024 * 1024         # scoped limit (> v5e 16 MiB default)
X_RESIDENT_BUDGET_BYTES = 16 * 1024 * 1024  # keep resident-X path well in budget


def _round_up(x, m):
    return (x + m - 1) // m * m


def _pick_tile(n, max_tile, min_blocks):
    """Largest 128-multiple divisor of n that is <= max_tile, leaving >= min_blocks blocks."""
    best = None
    t = LANES
    while t <= min(max_tile, n):
        if n % t == 0 and n // t >= min_blocks:
            best = t
        t += LANES
    return best if best is not None else LANES


def _vmem_bytes(n, fp, fq, tm, tk, out_itemsize, resident):
    adj = 2 * tm * tk                              # int8, double-buffered
    if resident:
        x = n * fp * 2                             # bf16, single buffer
    else:
        x = 2 * tk * fp * 2 + 2 * tm * fp * 2      # streamed xk + xi, double-buffered
    w = 2 * fp * fq * 2                            # fused weights, single buffer
    misc = 2 * tm * 4 + fq * 4                     # 1/deg + bias
    acc = tm * fp * 4                              # f32 accumulator scratch
    out = 2 * tm * fq * out_itemsize               # output, double-buffered
    return adj + x + w + misc + acc + out


def _project_store(agg_f32, xi_bf16, w_ref, b_ref, o_ref, *, fp, apply_relu):
    # Fused dual projection as two MXU issues on static weight slices
    # (avoids the (tm, 2*fp) lane-axis concatenate temp of the old epilogue).
    out = jnp.dot(agg_f32.astype(jnp.bfloat16), w_ref[:fp, :],
                  preferred_element_type=jnp.float32)
    out = out + jnp.dot(xi_bf16, w_ref[fp:, :],
                        preferred_element_type=jnp.float32)
    out = out + b_ref[...]                         # f32 epilogue (v5e-friendly)
    if apply_relu:
        out = jnp.maximum(out, 0.0)
    o_ref[...] = out.astype(o_ref.dtype)


def _sage_kernel_resident(adj_ref, x_ref, dinv_ref, w_ref, b_ref, o_ref,
                          acc_ref, *, tm, tk, fp, apply_relu):
    i = pl.program_id(0)
    k = pl.program_id(1)

    @pl.when(k == 0)
    def _():
        acc_ref[...] = jnp.zeros_like(acc_ref)

    # Neighbor sum for this row tile: acc += A[i, k] @ X[k].
    # int8 0/1 adjacency widened to bf16 in-registers (VPU work hidden under DMA).
    ks = pl.multiple_of(k * tk, LANES)
    acc_ref[...] += jnp.dot(adj_ref[...].astype(jnp.bfloat16),
                            x_ref[pl.ds(ks, tk), :],
                            preferred_element_type=jnp.float32)

    @pl.when(k == pl.num_programs(1) - 1)
    def _():
        agg = acc_ref[...] * dinv_ref[...]          # mean normalization (VPU)
        rs = pl.multiple_of(i * tm, LANES)
        xi = x_ref[pl.ds(rs, tm), :]                # self rows from resident X
        _project_store(agg, xi, w_ref, b_ref, o_ref, fp=fp, apply_relu=apply_relu)


def _sage_kernel_stream(adj_ref, xk_ref, xi_ref, dinv_ref, w_ref, b_ref, o_ref,
                        acc_ref, *, fp, apply_relu):
    # Fallback for graphs whose full X does not fit the VMEM budget.
    k = pl.program_id(1)

    @pl.when(k == 0)
    def _():
        acc_ref[...] = jnp.zeros_like(acc_ref)

    acc_ref[...] += jnp.dot(adj_ref[...].astype(jnp.bfloat16), xk_ref[...],
                            preferred_element_type=jnp.float32)

    @pl.when(k == pl.num_programs(1) - 1)
    def _():
        agg = acc_ref[...] * dinv_ref[...]
        _project_store(agg, xi_ref[...], w_ref, b_ref, o_ref, fp=fp,
                       apply_relu=apply_relu)


def sage_layer(adj_i8, deg_inv, x_pad, w_cat, b_pad, *, apply_relu, out_dtype):
    """One fused SAGEConv layer (mean aggregation + both projections + bias + ReLU).

    adj_i8:   [N, N]      raw 0/1 adjacency, int8 (N a multiple of 128)
    deg_inv:  [N, 1]      1 / max(deg, 1), f32
    x_pad:    [N, Fp]     node features padded to a multiple of 128 lanes, bf16
    w_cat:    [2*Fp, Fq]  [W_l ; W_r] zero-padded, bf16
    b_pad:    [1, Fq]     bias zero-padded, f32
    """
    n = adj_i8.shape[0]
    fp = x_pad.shape[1]
    fq = w_cat.shape[1]
    out_itemsize = jnp.dtype(out_dtype).itemsize

    resident = n * fp * 2 <= X_RESIDENT_BUDGET_BYTES

    # Big tiles (HBM-bound regime); shrink only if the VMEM budget is exceeded.
    tm = tk = LANES
    for max_t in (512, 384, 256, 128):
        tm = _pick_tile(n, max_t, min_blocks=2)   # >=2 row blocks -> both v7x TCs busy
        tk = _pick_tile(n, max_t, min_blocks=1)   # 256-multiples suit v6e/v7x MXU
        if _vmem_bytes(n, fp, fq, tm, tk, out_itemsize, resident) <= VMEM_BUDGET_BYTES:
            break

    grid = (n // tm, n // tk)

    adj_spec = pl.BlockSpec((tm, tk), lambda i, k: (i, k))
    dinv_spec = pl.BlockSpec((tm, 1), lambda i, k: (i, 0))
    w_spec = pl.BlockSpec((2 * fp, fq), lambda i, k: (0, 0),
                          pipeline_mode=pl.Buffered(1))
    b_spec = pl.BlockSpec((1, fq), lambda i, k: (0, 0),
                          pipeline_mode=pl.Buffered(1))
    out_spec = pl.BlockSpec((tm, fq), lambda i, k: (i, 0))

    if resident:
        kernel = functools.partial(_sage_kernel_resident, tm=tm, tk=tk, fp=fp,
                                   apply_relu=apply_relu)
        x_spec = pl.BlockSpec((n, fp), lambda i, k: (0, 0),
                              pipeline_mode=pl.Buffered(1))
        in_specs = [adj_spec, x_spec, dinv_spec, w_spec, b_spec]
        operands = (adj_i8, x_pad, deg_inv, w_cat, b_pad)
        x_bytes = n * fp * 2                       # X pulled from HBM exactly once
    else:
        kernel = functools.partial(_sage_kernel_stream, fp=fp,
                                   apply_relu=apply_relu)
        xk_spec = pl.BlockSpec((tk, fp), lambda i, k: (k, 0))
        xi_spec = pl.BlockSpec((tm, fp), lambda i, k: (i, 0))
        in_specs = [adj_spec, xk_spec, xi_spec, dinv_spec, w_spec, b_spec]
        operands = (adj_i8, x_pad, x_pad, deg_inv, w_cat, b_pad)
        x_bytes = (grid[0] + 1) * n * fp * 2       # re-streamed per row tile + self

    flops = 2 * n * n * fp + 2 * n * (2 * fp) * fq
    bytes_accessed = (n * n * 1                    # int8 adjacency stream
                      + x_bytes
                      + 2 * fp * fq * 2            # fused weights
                      + n * 4 + fq * 4             # 1/deg + bias
                      + n * fq * out_itemsize)     # output

    return pl.pallas_call(
        kernel,
        out_shape=jax.ShapeDtypeStruct((n, fq), out_dtype),
        grid_spec=pltpu.PrefetchScalarGridSpec(
            num_scalar_prefetch=0,
            grid=grid,
            in_specs=in_specs,
            out_specs=out_spec,
            scratch_shapes=[pltpu.VMEM((tm, fp), jnp.float32)],
        ),
        compiler_params=pltpu.CompilerParams(
            dimension_semantics=("parallel", "arbitrary"),
            vmem_limit_bytes=VMEM_LIMIT_BYTES,
        ),
        cost_estimate=pl.CostEstimate(flops=flops, transcendentals=0,
                                      bytes_accessed=bytes_accessed),
    )(*operands)


def init_sage_params(key, in_channels, hidden_channels, out_channels, num_layers):
    """Deterministic parameter init matching SAGEConv shapes (weights stored [in, out])."""
    dims_in = [in_channels] + [hidden_channels] * (num_layers - 1)
    dims_out = [hidden_channels] * (num_layers - 1) + [out_channels]
    params = []
    for f_in, f_out in zip(dims_in, dims_out):
        key, k1, k2, k3 = jax.random.split(key, 4)
        scale = 1.0 / jnp.sqrt(jnp.float32(f_in))
        w_l = jax.random.uniform(k1, (f_in, f_out), jnp.float32, -scale, scale)
        w_r = jax.random.uniform(k2, (f_in, f_out), jnp.float32, -scale, scale)
        b_l = jax.random.uniform(k3, (1, f_out), jnp.float32, -scale, scale)
        params.append((w_l, w_r, b_l))
    return params


def _prepare_layer(w_l, w_r, b_l):
    """Pad feature dims to 128 lanes and fuse [W_l ; W_r] into one bf16 weight slab."""
    f_in, f_out = w_l.shape
    fp = _round_up(f_in, LANES)
    fq = _round_up(f_out, LANES)
    wl_p = jnp.zeros((fp, fq), jnp.float32).at[:f_in, :f_out].set(w_l)
    wr_p = jnp.zeros((fp, fq), jnp.float32).at[:f_in, :f_out].set(w_r)
    w_cat = jnp.concatenate([wl_p, wr_p], axis=0).astype(jnp.bfloat16)
    b_p = jnp.zeros((1, fq), jnp.float32).at[:, :f_out].set(b_l)
    return w_cat, b_p


def sage_forward(x, adj, params):
    """Full SAGE forward (inference mode: dropout = identity)."""
    n, f0 = x.shape
    n_pad = _round_up(n, LANES)

    # Mean-aggregation normalizer kept as a [N,1] vector; adjacency stays raw
    # 0/1 but is streamed as int8 (exact) to halve the N^2 HBM traffic.
    deg = jnp.clip(jnp.sum(adj, axis=1, keepdims=True), 1.0, None)
    deg_inv = jnp.ones((n_pad, 1), jnp.float32).at[:n, :].set(
        (1.0 / deg).astype(jnp.float32))
    adj_i8 = jnp.zeros((n_pad, n_pad), jnp.int8).at[:n, :n].set(
        adj.astype(jnp.int8))

    # Pad features to 128 lanes once; h stays lane-padded (bf16) between layers.
    fp0 = _round_up(f0, LANES)
    h = jnp.zeros((n_pad, fp0), jnp.bfloat16).at[:n, :f0].set(
        x.astype(jnp.bfloat16))

    num_layers = len(params)
    for idx, (w_l, w_r, b_l) in enumerate(params):
        is_last = idx == num_layers - 1
        w_cat, b_p = _prepare_layer(w_l, w_r, b_l)
        h = sage_layer(adj_i8, deg_inv, h, w_cat, b_p,
                       apply_relu=not is_last,
                       out_dtype=jnp.float32 if is_last else jnp.bfloat16)
        # F.dropout(training=False) == identity.
    out_channels = params[-1][0].shape[1]
    return h[:n, :out_channels]


if __name__ == "__main__":
    # Small synthetic problem: 256 nodes, 16 -> 32 -> 32 -> 8 features, 3 layers.
    N = 256
    in_channels, hidden_channels, out_channels = 16, 32, 8
    num_layers = 3
    dropout = 0.5  # unused in inference mode

    key = jax.random.PRNGKey(0)
    key, kx, ka, kp = jax.random.split(key, 4)

    x = jax.random.normal(kx, (N, in_channels), dtype=jnp.float32)
    # Random sparse-ish adjacency with self loops, as a dense 0/1 matrix.
    adj = (jax.random.uniform(ka, (N, N)) < 0.05).astype(jnp.float32)
    adj = jnp.maximum(adj, jnp.eye(N, dtype=jnp.float32))

    params = init_sage_params(kp, in_channels, hidden_channels, out_channels,
                              num_layers)

    out = jax.jit(sage_forward)(x, adj, params)
    jax.block_until_ready(out)

    # Pure-JAX f32 reference (kernel uses bf16 operands with f32 accumulation,
    # so tolerance is relaxed vs. a pure-f32 path).
    deg = jnp.clip(jnp.sum(adj, axis=1, keepdims=True), 1.0, None)
    adj_mean = adj / deg
    h_ref = x
    for i, (w_l, w_r, b_l) in enumerate(params):
        h_ref = adj_mean @ h_ref @ w_l + h_ref @ w_r + b_l
        if i != len(params) - 1:
            h_ref = jnp.maximum(h_ref, 0.0)

    assert out.shape == (N, out_channels)
    err = float(jnp.max(jnp.abs(out - h_ref)))
    ref_scale = float(jnp.max(jnp.abs(h_ref))) + 1e-6
    assert err <= 0.05 * ref_scale + 5e-2, f"max abs err {err} vs ref scale {ref_scale}"

    print("KERNEL_OK")
</pallas_src>

<mosaic_0001>
module attributes {stable_mosaic.version = 11 : i64} {
  func.func @_sage_kernel_resident(%arg0: i32, %arg1: i32, %arg2: memref<128x256xi8, #tpu.memory_space<vmem>>, %arg3: memref<256x128xbf16, #tpu.memory_space<vmem>>, %arg4: memref<128x1xf32, #tpu.memory_space<vmem>>, %arg5: memref<256x128xbf16, #tpu.memory_space<vmem>>, %arg6: memref<1x128xf32, #tpu.memory_space<vmem>>, %arg7: memref<128x128xbf16, #tpu.memory_space<vmem>>, %arg8: memref<128x128xf32, #tpu.memory_space<vmem>>) attributes {dimension_semantics = [#tpu.dimension_semantics<parallel>, #tpu.dimension_semantics<arbitrary>], iteration_bounds = array<i64: 2, 1>, scalar_prefetch = 0 : i64, scratch_operands = 1 : i64, tpu.core_type = #tpu.core_type<tc>, window_params = [{transform_indices = @transform_0, window_bounds = array<i64: 128, 256>}, {pipeline_mode = #tpu.pipeline_mode<synchronous>, transform_indices = @transform_1, window_bounds = array<i64: 256, 128>}, {transform_indices = @transform_2, window_bounds = array<i64: 128, 1>}, {pipeline_mode = #tpu.pipeline_mode<synchronous>, transform_indices = @transform_3, window_bounds = array<i64: 256, 128>}, {pipeline_mode = #tpu.pipeline_mode<synchronous>, transform_indices = @transform_4, window_bounds = array<i64: 1, 128>}, {transform_indices = @transform_5, window_bounds = array<i64: 128, 128>}]} {
    %c0_i32 = arith.constant 0 : i32
    %0 = arith.cmpi eq, %arg1, %c0_i32 : i32
    %1 = arith.extui %0 : i1 to i32
    %c0_i32_0 = arith.constant 0 : i32
    %2 = arith.cmpi ne, %1, %c0_i32_0 : i32
    scf.if %2 {
      %cst_9 = arith.constant 0.000000e+00 : f32
      %16 = vector.broadcast %cst_9 : f32 to vector<128x128xf32>
      %c0_10 = arith.constant 0 : index
      %c0_11 = arith.constant 0 : index
      %17 = vector.load %arg8[%c0_10, %c0_11] : memref<128x128xf32, #tpu.memory_space<vmem>>, vector<128x128xf32>
      tpu.vector_store %arg8[%c0_10, %c0_11], %16 {strides = array<i32>} : memref<128x128xf32, #tpu.memory_space<vmem>>, vector<128x128xf32>,
    } else {
    }
    %c256_i32 = arith.constant 256 : i32
    %3 = arith.muli %arg1, %c256_i32 : i32
    %4 = tpu.assume_multiple %3, 128 : i32
    %c0 = arith.constant 0 : index
    %c0_1 = arith.constant 0 : index
    %5 = vector.load %arg8[%c0, %c0_1] : memref<128x128xf32, #tpu.memory_space<vmem>>, vector<128x128xf32>
    %c0_2 = arith.constant 0 : index
    %c0_3 = arith.constant 0 : index
    %6 = vector.load %arg2[%c0_2, %c0_3] : memref<128x256xi8, #tpu.memory_space<vmem>>, vector<128x256xi8>
    %7 = arith.sitofp %6 : vector<128x256xi8> to vector<128x256xbf16>
    %8 = arith.index_cast %4 : i32 to index
    %c0_4 = arith.constant 0 : index
    %9 = vector.load %arg3[%8, %c0_4] : memref<256x128xbf16, #tpu.memory_space<vmem>>, vector<256x128xbf16>
    %cst = arith.constant dense<0.000000e+00> : vector<128x128xf32>
    %10 = tpu.matmul %7, %9, %cst {dimension_numbers = #tpu.dot_dimension_numbers<[1], [0], [0], [1], [0, 0, 1, 1], [], []>} : vector<128x256xbf16>, vector<256x128xbf16>, vector<128x128xf32> -> vector<128x128xf32>
    %11 = arith.addf %5, %10 : vector<128x128xf32>
    %c0_5 = arith.constant 0 : index
    %c0_6 = arith.constant 0 : index
    %12 = vector.load %arg8[%c0_5, %c0_6] : memref<128x128xf32, #tpu.memory_space<vmem>>, vector<128x128xf32>
    tpu.vector_store %arg8[%c0_5, %c0_6], %11 {strides = array<i32>} : memref<128x128xf32, #tpu.memory_space<vmem>>, vector<128x128xf32>,
    %c0_i32_7 = arith.constant 0 : i32
    %13 = arith.cmpi eq, %arg1, %c0_i32_7 : i32
    %14 = arith.extui %13 : i1 to i32
    %c0_i32_8 = arith.constant 0 : i32
    %15 = arith.cmpi ne, %14, %c0_i32_8 : i32
    scf.if %15 {
      %c0_9 = arith.constant 0 : index
      %c0_10 = arith.constant 0 : index
      %16 = vector.load %arg8[%c0_9, %c0_10] : memref<128x128xf32, #tpu.memory_space<vmem>>, vector<128x128xf32>
      %c0_11 = arith.constant 0 : index
      %c0_12 = arith.constant 0 : index
      %17 = vector.load %arg4[%c0_11, %c0_12] : memref<128x1xf32, #tpu.memory_space<vmem>>, vector<128x1xf32>
      %18 = vector.broadcast %17 : vector<128x1xf32> to vector<128x128xf32>
      %19 = arith.mulf %16, %18 : vector<128x128xf32>
      %c128_i32 = arith.constant 128 : i32
      %20 = arith.muli %arg0, %c128_i32 : i32
      %21 = tpu.assume_multiple %20, 128 : i32
      %22 = arith.index_cast %21 : i32 to index
      %c0_13 = arith.constant 0 : index
      %23 = vector.load %arg3[%22, %c0_13] : memref<256x128xbf16, #tpu.memory_space<vmem>>, vector<128x128xbf16>
      %24 = arith.truncf %19 : vector<128x128xf32> to vector<128x128xbf16>
      %c0_14 = arith.constant 0 : index
      %c0_15 = arith.constant 0 : index
      %25 = vector.load %arg5[%c0_14, %c0_15] : memref<256x128xbf16, #tpu.memory_space<vmem>>, vector<128x128xbf16>
      %cst_16 = arith.constant dense<0.000000e+00> : vector<128x128xf32>
      %26 = tpu.matmul %24, %25, %cst_16 {dimension_numbers = #tpu.dot_dimension_numbers<[1], [0], [0], [1], [0, 0, 1, 1], [], []>} : vector<128x128xbf16>, vector<128x128xbf16>, vector<128x128xf32> -> vector<128x128xf32>
      %c128 = arith.constant 128 : index
      %c0_17 = arith.constant 0 : index
      %27 = vector.load %arg5[%c128, %c0_17] : memref<256x128xbf16, #tpu.memory_space<vmem>>, vector<128x128xbf16>
      %cst_18 = arith.constant dense<0.000000e+00> : vector<128x128xf32>
      %28 = tpu.matmul %23, %27, %cst_18 {dimension_numbers = #tpu.dot_dimension_numbers<[1], [0], [0], [1], [0, 0, 1, 1], [], []>} : vector<128x128xbf16>, vector<128x128xbf16>, vector<128x128xf32> -> vector<128x128xf32>
      %29 = arith.addf %26, %28 : vector<128x128xf32>
      %c0_19 = arith.constant 0 : index
      %c0_20 = arith.constant 0 : index
      %30 = vector.load %arg6[%c0_19, %c0_20] : memref<1x128xf32, #tpu.memory_space<vmem>>, vector<1x128xf32>
      %31 = vector.broadcast %30 : vector<1x128xf32> to vector<128x128xf32>
      %32 = arith.addf %29, %31 : vector<128x128xf32>
      %cst_21 = arith.constant 0.000000e+00 : f32
      %33 = vector.broadcast %cst_21 : f32 to vector<128x128xf32>
      %34 = arith.maximumf %32, %33 : vector<128x128xf32>
      %35 = arith.truncf %34 : vector<128x128xf32> to vector<128x128xbf16>
      %c0_22 = arith.constant 0 : index
      %c0_23 = arith.constant 0 : index
      %36 = vector.load %arg7[%c0_22, %c0_23] : memref<128x128xbf16, #tpu.memory_space<vmem>>, vector<128x128xbf16>
      tpu.vector_store %arg7[%c0_22, %c0_23], %35 {strides = array<i32>} : memref<128x128xbf16, #tpu.memory_space<vmem>>, vector<128x128xbf16>,
    } else {
    }
    return
  }
  func.func @transform_0(%arg0: i32, %arg1: i32) -> (i32, i32) {
    %c0_i32 = arith.constant 0 : i32
    return %arg0, %arg1 : i32, i32
  }
  func.func @transform_1(%arg0: i32, %arg1: i32) -> (i32, i32) {
    %c0_i32 = arith.constant 0 : i32
    %c0_i32_0 = arith.constant 0 : i32
    %c0_i32_1 = arith.constant 0 : i32
    return %c0_i32, %c0_i32_0 : i32, i32
  }
  func.func @transform_2(%arg0: i32, %arg1: i32) -> (i32, i32) {
    %c0_i32 = arith.constant 0 : i32
    %c0_i32_0 = arith.constant 0 : i32
    return %arg0, %c0_i32 : i32, i32
  }
  func.func @transform_3(%arg0: i32, %arg1: i32) -> (i32, i32) {
    %c0_i32 = arith.constant 0 : i32
    %c0_i32_0 = arith.constant 0 : i32
    %c0_i32_1 = arith.constant 0 : i32
    return %c0_i32, %c0_i32_0 : i32, i32
  }
  func.func @transform_4(%arg0: i32, %arg1: i32) -> (i32, i32) {
    %c0_i32 = arith.constant 0 : i32
    %c0_i32_0 = arith.constant 0 : i32
    %c0_i32_1 = arith.constant 0 : i32
    return %c0_i32, %c0_i32_0 : i32, i32
  }
  func.func @transform_5(%arg0: i32, %arg1: i32) -> (i32, i32) {
    %c0_i32 = arith.constant 0 : i32
    %c0_i32_0 = arith.constant 0 : i32
    return %arg0, %c0_i32 : i32, i32
  }
}

module attributes {stable_mosaic.version = 11 : i64} {
  func.func @_sage_kernel_resident(%arg0: i32, %arg1: i32, %arg2: memref<128x256xi8, #tpu.memory_space<vmem>>, %arg3: memref<256x128xbf16, #tpu.memory_space<vmem>>, %arg4: memref<128x1xf32, #tpu.memory_space<vmem>>, %arg5: memref<256x128xbf16, #tpu.memory_space<vmem>>, %arg6: memref<1x128xf32, #tpu.memory_space<vmem>>, %arg7: memref<128x128xf32, #tpu.memory_space<vmem>>, %arg8: memref<128x128xf32, #tpu.memory_space<vmem>>) attributes {dimension_semantics = [#tpu.dimension_semantics<parallel>, #tpu.dimension_semantics<arbitrary>], iteration_bounds = array<i64: 2, 1>, scalar_prefetch = 0 : i64, scratch_operands = 1 : i64, tpu.core_type = #tpu.core_type<tc>, window_params = [{transform_indices = @transform_0, window_bounds = array<i64: 128, 256>}, {pipeline_mode = #tpu.pipeline_mode<synchronous>, transform_indices = @transform_1, window_bounds = array<i64: 256, 128>}, {transform_indices = @transform_2, window_bounds = array<i64: 128, 1>}, {pipeline_mode = #tpu.pipeline_mode<synchronous>, transform_indices = @transform_3, window_bounds = array<i64: 256, 128>}, {pipeline_mode = #tpu.pipeline_mode<synchronous>, transform_indices = @transform_4, window_bounds = array<i64: 1, 128>}, {transform_indices = @transform_5, window_bounds = array<i64: 128, 128>}]} {
    %c0_i32 = arith.constant 0 : i32
    %0 = arith.cmpi eq, %arg1, %c0_i32 : i32
    %1 = arith.extui %0 : i1 to i32
    %c0_i32_0 = arith.constant 0 : i32
    %2 = arith.cmpi ne, %1, %c0_i32_0 : i32
    scf.if %2 {
      %cst_9 = arith.constant 0.000000e+00 : f32
      %16 = vector.broadcast %cst_9 : f32 to vector<128x128xf32>
      %c0_10 = arith.constant 0 : index
      %c0_11 = arith.constant 0 : index
      %17 = vector.load %arg8[%c0_10, %c0_11] : memref<128x128xf32, #tpu.memory_space<vmem>>, vector<128x128xf32>
      tpu.vector_store %arg8[%c0_10, %c0_11], %16 {strides = array<i32>} : memref<128x128xf32, #tpu.memory_space<vmem>>, vector<128x128xf32>,
    } else {
    }
    %c256_i32 = arith.constant 256 : i32
    %3 = arith.muli %arg1, %c256_i32 : i32
    %4 = tpu.assume_multiple %3, 128 : i32
    %c0 = arith.constant 0 : index
    %c0_1 = arith.constant 0 : index
    %5 = vector.load %arg8[%c0, %c0_1] : memref<128x128xf32, #tpu.memory_space<vmem>>, vector<128x128xf32>
    %c0_2 = arith.constant 0 : index
    %c0_3 = arith.constant 0 : index
    %6 = vector.load %arg2[%c0_2, %c0_3] : memref<128x256xi8, #tpu.memory_space<vmem>>, vector<128x256xi8>
    %7 = arith.sitofp %6 : vector<128x256xi8> to vector<128x256xbf16>
    %8 = arith.index_cast %4 : i32 to index
    %c0_4 = arith.constant 0 : index
    %9 = vector.load %arg3[%8, %c0_4] : memref<256x128xbf16, #tpu.memory_space<vmem>>, vector<256x128xbf16>
    %cst = arith.constant dense<0.000000e+00> : vector<128x128xf32>
    %10 = tpu.matmul %7, %9, %cst {dimension_numbers = #tpu.dot_dimension_numbers<[1], [0], [0], [1], [0, 0, 1, 1], [], []>} : vector<128x256xbf16>, vector<256x128xbf16>, vector<128x128xf32> -> vector<128x128xf32>
    %11 = arith.addf %5, %10 : vector<128x128xf32>
    %c0_5 = arith.constant 0 : index
    %c0_6 = arith.constant 0 : index
    %12 = vector.load %arg8[%c0_5, %c0_6] : memref<128x128xf32, #tpu.memory_space<vmem>>, vector<128x128xf32>
    tpu.vector_store %arg8[%c0_5, %c0_6], %11 {strides = array<i32>} : memref<128x128xf32, #tpu.memory_space<vmem>>, vector<128x128xf32>,
    %c0_i32_7 = arith.constant 0 : i32
    %13 = arith.cmpi eq, %arg1, %c0_i32_7 : i32
    %14 = arith.extui %13 : i1 to i32
    %c0_i32_8 = arith.constant 0 : i32
    %15 = arith.cmpi ne, %14, %c0_i32_8 : i32
    scf.if %15 {
      %c0_9 = arith.constant 0 : index
      %c0_10 = arith.constant 0 : index
      %16 = vector.load %arg8[%c0_9, %c0_10] : memref<128x128xf32, #tpu.memory_space<vmem>>, vector<128x128xf32>
      %c0_11 = arith.constant 0 : index
      %c0_12 = arith.constant 0 : index
      %17 = vector.load %arg4[%c0_11, %c0_12] : memref<128x1xf32, #tpu.memory_space<vmem>>, vector<128x1xf32>
      %18 = vector.broadcast %17 : vector<128x1xf32> to vector<128x128xf32>
      %19 = arith.mulf %16, %18 : vector<128x128xf32>
      %c128_i32 = arith.constant 128 : i32
      %20 = arith.muli %arg0, %c128_i32 : i32
      %21 = tpu.assume_multiple %20, 128 : i32
      %22 = arith.index_cast %21 : i32 to index
      %c0_13 = arith.constant 0 : index
      %23 = vector.load %arg3[%22, %c0_13] : memref<256x128xbf16, #tpu.memory_space<vmem>>, vector<128x128xbf16>
      %24 = arith.truncf %19 : vector<128x128xf32> to vector<128x128xbf16>
      %c0_14 = arith.constant 0 : index
      %c0_15 = arith.constant 0 : index
      %25 = vector.load %arg5[%c0_14, %c0_15] : memref<256x128xbf16, #tpu.memory_space<vmem>>, vector<128x128xbf16>
      %cst_16 = arith.constant dense<0.000000e+00> : vector<128x128xf32>
      %26 = tpu.matmul %24, %25, %cst_16 {dimension_numbers = #tpu.dot_dimension_numbers<[1], [0], [0], [1], [0, 0, 1, 1], [], []>} : vector<128x128xbf16>, vector<128x128xbf16>, vector<128x128xf32> -> vector<128x128xf32>
      %c128 = arith.constant 128 : index
      %c0_17 = arith.constant 0 : index
      %27 = vector.load %arg5[%c128, %c0_17] : memref<256x128xbf16, #tpu.memory_space<vmem>>, vector<128x128xbf16>
      %cst_18 = arith.constant dense<0.000000e+00> : vector<128x128xf32>
      %28 = tpu.matmul %23, %27, %cst_18 {dimension_numbers = #tpu.dot_dimension_numbers<[1], [0], [0], [1], [0, 0, 1, 1], [], []>} : vector<128x128xbf16>, vector<128x128xbf16>, vector<128x128xf32> -> vector<128x128xf32>
      %29 = arith.addf %26, %28 : vector<128x128xf32>
      %c0_19 = arith.constant 0 : index
      %c0_20 = arith.constant 0 : index
      %30 = vector.load %arg6[%c0_19, %c0_20] : memref<1x128xf32, #tpu.memory_space<vmem>>, vector<1x128xf32>
      %31 = vector.broadcast %30 : vector<1x128xf32> to vector<128x128xf32>
      %32 = arith.addf %29, %31 : vector<128x128xf32>
      %c0_21 = arith.constant 0 : index
      %c0_22 = arith.constant 0 : index
      %33 = vector.load %arg7[%c0_21, %c0_22] : memref<128x128xf32, #tpu.memory_space<vmem>>, vector<128x128xf32>
      tpu.vector_store %arg7[%c0_21, %c0_22], %32 {strides = array<i32>} : memref<128x128xf32, #tpu.memory_space<vmem>>, vector<128x128xf32>,
    } else {
    }
    return
  }
  func.func @transform_0(%arg0: i32, %arg1: i32) -> (i32, i32) {
    %c0_i32 = arith.constant 0 : i32
    return %arg0, %arg1 : i32, i32
  }
  func.func @transform_1(%arg0: i32, %arg1: i32) -> (i32, i32) {
    %c0_i32 = arith.constant 0 : i32
    %c0_i32_0 = arith.constant 0 : i32
    %c0_i32_1 = arith.constant 0 : i32
    return %c0_i32, %c0_i32_0 : i32, i32
  }
  func.func @transform_2(%arg0: i32, %arg1: i32) -> (i32, i32) {
    %c0_i32 = arith.constant 0 : i32
    %c0_i32_0 = arith.constant 0 : i32
    return %arg0, %c0_i32 : i32, i32
  }
  func.func @transform_3(%arg0: i32, %arg1: i32) -> (i32, i32) {
    %c0_i32 = arith.constant 0 : i32
    %c0_i32_0 = arith.constant 0 : i32
    %c0_i32_1 = arith.constant 0 : i32
    return %c0_i32, %c0_i32_0 : i32, i32
  }
  func.func @transform_4(%arg0: i32, %arg1: i32) -> (i32, i32) {
    %c0_i32 = arith.constant 0 : i32
    %c0_i32_0 = arith.constant 0 : i32
    %c0_i32_1 = arith.constant 0 : i32
    return %c0_i32, %c0_i32_0 : i32, i32
  }
  func.func @transform_5(%arg0: i32, %arg1: i32) -> (i32, i32) {
    %c0_i32 = arith.constant 0 : i32
    %c0_i32_0 = arith.constant 0 : i32
    return %arg0, %c0_i32 : i32, i32
  }
}

</mosaic_0001>

<llo_original>
// kernel: sage_forward.5
$region0: #{sage_forward.5}
  #allocation0 [shape = 'u32[]', space=smem, size = 0x4, offset = 0x4, fixed_abs, tag = 'smem constant byte address 0x4 - core index']
  #allocation1 [shape = 'u32[72,128]{1,0:T(1,128)}', space=vmem, size = 0x9000, scoped, tag = 'internal scratch']
  #allocation2 [shape = 'f32[128,128]{1,0:T(8,128)}', space=vmem, size = 0x10000, scoped, tag = 'scratch operand']
  %s0 = inlined_call_operand.vmem [shape: s8[256,256], index: 0, kind: input, shape index: {}]
  %s1 = inlined_call_operand.vmem [shape: bf16[256,128], index: 1, kind: input, shape index: {}]
  %s2 = inlined_call_operand.vmem [shape: f32[256,1], index: 2, kind: input, shape index: {}]
  %s3 = inlined_call_operand.vmem [shape: bf16[256,128], index: 3, kind: input, shape index: {}]
  %s4 = inlined_call_operand.vmem [shape: f32[1,128], index: 4, kind: input, shape index: {}]
  %s5 = inlined_call_operand.vmem [shape: f32[256,128], index: 5, kind: output, shape index: {}]
  %s6 = sld [smem:[#allocation0]]
  $region61: #{sage_forward.5} parent=0
    _
  %s8 = ssub.s32 1, %s6
  %s9 = scalar_select 0, %s8, %s6
  loop: start=0, step=1, limit=4
  $region2: #{sage_forward.5} parent=0 // loop_pre_header
    _
  $region3: #{sage_forward.5} parent=0 // loop_header
    %s11 = sphi 0, %s15
    %p12 = scmp.ge.s32.totalorder %s11, 4
    %s18 = sphi 0, %s30
    %s19 = sphi 0, %s26
    %s20 = sphi 0, %s18
    %s21 = sphi 0, %s19
    %s22 = sphi 0, %s20
    %s23 = sphi 0, %s21
    %s35 = sphi 0, %s37
    %s38 = sphi 0, %s35
    %s39 = sphi 0, %s38
    %s55 = sphi 0, %s39
    %s59 = sphi 0, %s59
    %s61 = sphi 0, %s59
    %s62 = sphi 0, %s61
    %s76 = sphi 0, %s62
    %s82 = sphi 0, %s84
    %s85 = sphi 0, %s82
    %s86 = sphi 0, %s85
    %s102 = sphi 0, %s86
    %s106 = sphi 0, %s106
    %s108 = sphi 0, %s106
    %s109 = sphi 0, %s108
    %s123 = sphi 0, %s109
    %s127 = sphi 0, %s127
    %s129 = sphi 0, %s127
    %s130 = sphi 0, %s129
    %s144 = sphi 0, %s130
    %s150 = sphi 0, %s152
    %s153 = sphi 0, %s150
    %s154 = sphi 0, %s153
    %s170 = sphi 0, %s154
  $region4: #{sage_forward.5} parent=0 // loop_header_branch
    %14 = sbr.rel (%p12) target = $region8
  $region5: #{sage_forward.5} parent=0 // loop_body
    %s16 = ssub.s32 %s11, 1
    %s17 = ssub.s32 %s11, 2
    %s24 = sadd.s32 1, %s19
    %p25 = scmp.ge.s32.totalorder %s24, 1
    %s26 = scalar_select %p25, 0, %s24
    %s27 = sadd.s32 1, %s18
    %s28 = scalar_select %p25, %s27, %s18
    %p29 = scmp.ge.s32.totalorder %s28, 2
    %s30 = scalar_select %p29, 0, %s28
    %s31 = ssub.s32 %s18, %s30
    %s32 = ssub.s32 %s19, %s26
    %s33 = sor.u32 %s31, %s32
    %p34 = scmp.eq.s32.totalorder %s33, 0
    %s36 = sadd.s32 %s35, 1
    %s37 = scalar_select %p34, %s35, %s36
    %p40 = pneg %p34
    %p41 = scmp.eq.s32.totalorder %s11, 1
    %p42 = por %p40, %p41
    %p43 = scmp.ne.s32.totalorder %s35, %s38
    %p44 = scmp.eq.s32.totalorder %s11, 0
    %p45 = por %p43, %p44
    %p46 = scmp.ne.s32.totalorder %s35, %s38
    %p47 = scmp.eq.s32.totalorder %s16, 1
    %p48 = por %p46, %p47
    %p49 = scmp.ne.s32.totalorder %s38, %s39
    %p50 = scmp.eq.s32.totalorder %s16, 0
    %p51 = por %p49, %p50
    %p52 = scmp.ne.s32.totalorder %s38, %s39
    %p53 = scmp.eq.s32.totalorder %s17, 1
    %p54 = por %p52, %p53
    %p56 = scmp.ne.s32.totalorder %s39, %s55
    %p57 = scmp.eq.s32.totalorder %s17, 0
    %p58 = por %p56, %p57
    %s60 = sadd.s32 %s59, 1
    %p63 = scmp.eq.s32.totalorder %s11, 1
    %p64 = scmp.ne.s32.totalorder %s59, %s61
    %p65 = scmp.eq.s32.totalorder %s11, 0
    %p66 = por %p64, %p65
    %p67 = scmp.ne.s32.totalorder %s59, %s61
    %p68 = scmp.eq.s32.totalorder %s16, 1
    %p69 = por %p67, %p68
    %p70 = scmp.ne.s32.totalorder %s61, %s62
    %p71 = scmp.eq.s32.totalorder %s16, 0
    %p72 = por %p70, %p71
    %p73 = scmp.ne.s32.totalorder %s61, %s62
    %p74 = scmp.eq.s32.totalorder %s17, 1
    %p75 = por %p73, %p74
    %p77 = scmp.ne.s32.totalorder %s62, %s76
    %p78 = scmp.eq.s32.totalorder %s17, 0
    %p79 = por %p77, %p78
    %s80 = ssub.s32 %s18, %s30
    %p81 = scmp.eq.s32.totalorder %s80, 0
    %s83 = sadd.s32 %s82, 1
    %s84 = scalar_select %p81, %s82, %s83
    %p87 = pneg %p81
    %p88 = scmp.eq.s32.totalorder %s11, 1
    %p89 = por %p87, %p88
    %p90 = scmp.ne.s32.totalorder %s82, %s85
    %p91 = scmp.eq.s32.totalorder %s11, 0
    %p92 = por %p90, %p91
    %p93 = scmp.ne.s32.totalorder %s82, %s85
    %p94 = scmp.eq.s32.totalorder %s16, 1
    %p95 = por %p93, %p94
    %p96 = scmp.ne.s32.totalorder %s85, %s86
    %p97 = scmp.eq.s32.totalorder %s16, 0
    %p98 = por %p96, %p97
    %p99 = scmp.ne.s32.totalorder %s85, %s86
    %p100 = scmp.eq.s32.totalorder %s17, 1
    %p101 = por %p99, %p100
    %p103 = scmp.ne.s32.totalorder %s86, %s102
    %p104 = scmp.eq.s32.totalorder %s17, 0
    %p105 = por %p103, %p104
    %s107 = sadd.s32 %s106, 1
    %p110 = scmp.eq.s32.totalorder %s11, 1
    %p111 = scmp.ne.s32.totalorder %s106, %s108
    %p112 = scmp.eq.s32.totalorder %s11, 0
    %p113 = por %p111, %p112
    %p114 = scmp.ne.s32.totalorder %s106, %s108
    %p115 = scmp.eq.s32.totalorder %s16, 1
    %p116 = por %p114, %p115
    %p117 = scmp.ne.s32.totalorder %s108, %s109
    %p118 = scmp.eq.s32.totalorder %s16, 0
    %p119 = por %p117, %p118
    %p120 = scmp.ne.s32.totalorder %s108, %s109
    %p121 = scmp.eq.s32.totalorder %s17, 1
    %p122 = por %p120, %p121
    %p124 = scmp.ne.s32.totalorder %s109, %s123
    %p125 = scmp.eq.s32.totalorder %s17, 0
    %p126 = por %p124, %p125
    %s128 = sadd.s32 %s127, 1
    %p131 = scmp.eq.s32.totalorder %s11, 1
    %p132 = scmp.ne.s32.totalorder %s127, %s129
    %p133 = scmp.eq.s32.totalorder %s11, 0
    %p134 = por %p132, %p133
    %p135 = scmp.ne.s32.totalorder %s127, %s129
    %p136 = scmp.eq.s32.totalorder %s16, 1
    %p137 = por %p135, %p136
    %p138 = scmp.ne.s32.totalorder %s129, %s130
    %p139 = scmp.eq.s32.totalorder %s16, 0
    %p140 = por %p138, %p139
    %p141 = scmp.ne.s32.totalorder %s129, %s130
    %p142 = scmp.eq.s32.totalorder %s17, 1
    %p143 = por %p141, %p142
    %p145 = scmp.ne.s32.totalorder %s130, %s144
    %p146 = scmp.eq.s32.totalorder %s17, 0
    %p147 = por %p145, %p146
    %s148 = ssub.s32 %s18, %s30
    %p149 = scmp.eq.s32.totalorder %s148, 0
    %s151 = sadd.s32 %s150, 1
    %s152 = scalar_select %p149, %s150, %s151
    %p155 = pneg %p149
    %p156 = scmp.eq.s32.totalorder %s11, 1
    %p157 = por %p155, %p156
    %p158 = scmp.ne.s32.totalorder %s150, %s153
    %p159 = scmp.eq.s32.totalorder %s11, 0
    %p160 = por %p158, %p159
    %p161 = scmp.ne.s32.totalorder %s150, %s153
    %p162 = scmp.eq.s32.totalorder %s16, 1
    %p163 = por %p161, %p162
    %p164 = scmp.ne.s32.totalorder %s153, %s154
    %p165 = scmp.eq.s32.totalorder %s16, 0
    %p166 = por %p164, %p165
    %p167 = scmp.ne.s32.totalorder %s153, %s154
    %p168 = scmp.eq.s32.totalorder %s17, 1
    %p169 = por %p167, %p168
    %p171 = scmp.ne.s32.totalorder %s154, %s170
    %p172 = scmp.eq.s32.totalorder %s17, 0
    %p173 = por %p171, %p172
    %p174 = scmp.le.s32.totalorder 1, %s11
    %p175 = scmp.lt.s32.totalorder %s11, 3
    %p176 = pnand %p174, %p175
    %p177 = pneg %p176
    // Predicated region
    $region9: #{sage_forward.5} parent=5 // pred_check
      _
    $region10: #{sage_forward.5} parent=5 // pred_check_branch
      %179 = sbr.rel (%p176) target = $region12
    $region11: #{sage_forward.5} parent=5 // pred_region
      %s180 = ssub.s32 %s11, 1
      // Predicated region
      $region13: #{sage_forward.5} parent=11 // pred_check
        %p181 = pneg %p72
      $region14: #{sage_forward.5} parent=11 // pred_check_branch
        %183 = sbr.rel (%p181) target = $region16
      $region15: #{sage_forward.5} parent=11 // pred_region
        _
      $region16: #{sage_forward.5} parent=11 // pred_fallthru
        _
      // Predicated region
      $region17: #{sage_forward.5} parent=11 // pred_check
        %p184 = pneg %p119
      $region18: #{sage_forward.5} parent=11 // pred_check_branch
        %186 = sbr.rel (%p184) target = $region20
      $region19: #{sage_forward.5} parent=11 // pred_region
        _
      $region20: #{sage_forward.5} parent=11 // pred_fallthru
        _
      // Predicated region
      $region21: #{sage_forward.5} parent=11 // pred_check
        %p187 = pneg %p140
      $region22: #{sage_forward.5} parent=11 // pred_check_branch
        %189 = sbr.rel (%p187) target = $region24
      $region23: #{sage_forward.5} parent=11 // pred_region
        _
      $region24: #{sage_forward.5} parent=11 // pred_fallthru
        _
    $region12: #{sage_forward.5} parent=5 // pred_fallthru
      _
    %p190 = scmp.lt.s32.totalorder %s11, 2
    // Predicated region
    $region25: #{sage_forward.5} parent=5 // pred_check
      %p191 = pneg %p190
    $region26: #{sage_forward.5} parent=5 // pred_check_branch
      %193 = sbr.rel (%p191) target = $region28
    $region27: #{sage_forward.5} parent=5 // pred_region
      // Predicated region
      $region29: #{sage_forward.5} parent=27 // pred_check
        %p194 = pneg %p45
      $region30: #{sage_forward.5} parent=27 // pred_check_branch
        %196 = sbr.rel (%p194) target = $region32
      $region31: #{sage_forward.5} parent=27 // pred_region
        %s197 = smul.u32 4, %s18
        %s198 = smul.u32 2, %s19
        %p199 = scmp.lt.s32.totalorder %s197, 7
        %s200 = scalar_select %p199, %s197, 7
        %p201 = scmp.lt.s32.totalorder %s198, 1
        %s202 = scalar_select %p201, %s198, 1
        %s203 = smul.addr %s200, 2
        %s204 = sadd.s32 %s202, %s203
        %s205 = smul.addr %s204, 8
        %s206 = scalar_lea.vmem %s0, %s205
        %s207 = smul.u32 4, %s18
        %s208 = smul.u32 2, %s19
      $region32: #{sage_forward.5} parent=27 // pred_fallthru
        _
      // Predicated region
      $region33: #{sage_forward.5} parent=27 // pred_check
        %p209 = pneg %p92
      $region34: #{sage_forward.5} parent=27 // pred_check_branch
        %211 = sbr.rel (%p209) target = $region36
      $region35: #{sage_forward.5} parent=27 // pred_region
        %s212 = smul.u32 16, %s18
        %p213 = scmp.lt.s32.totalorder %s212, 31
        %s214 = scalar_select %p213, %s212, 31
        %s215 = smul.addr %s214, 8
        %s216 = scalar_lea.vmem %s2, %s215
        %s217 = smul.u32 16, %s18
      $region36: #{sage_forward.5} parent=27 // pred_fallthru
        _
    $region28: #{sage_forward.5} parent=5 // pred_fallthru
      _
    %p218 = scmp.le.s32.totalorder 1, %s11
    %p219 = scmp.lt.s32.totalorder %s11, 3
    %p220 = pnand %p218, %p219
    %p221 = pneg %p220
    // Predicated region
    $region37: #{sage_forward.5} parent=5 // pred_check
      _
    $region38: #{sage_forward.5} parent=5 // pred_check_branch
      %223 = sbr.rel (%p220) target = $region40
    $region39: #{sage_forward.5} parent=5 // pred_region
      %s224 = ssub.s32 %s11, 1
      %s225 = smul.u32 4, %s20
      %s226 = smul.u32 2, %s21
      %p227 = scmp.lt.s32.totalorder %s225, 7
      %s228 = scalar_select %p227, %s225, 7
      %p229 = scmp.lt.s32.totalorder %s226, 1
      %s230 = scalar_select %p229, %s226, 1
      %s231 = smul.addr %s228, 2
      %s232 = sadd.s32 %s230, %s231
      %s233 = smul.addr %s232, 8
      %s234 = scalar_lea.vmem %s0, %s233
      %p235 = pneg %p51
      %p236 = pneg %p48
      %p237 = pneg %p72
      %p238 = pneg %p69
      %s239 = smul.u32 16, %s20
      %p240 = scmp.lt.s32.totalorder %s239, 31
      %s241 = scalar_select %p240, %s239, 31
      %s242 = smul.addr %s241, 8
      %s243 = scalar_lea.vmem %s2, %s242
      %p244 = pneg %p98
      %p245 = pneg %p95
      %p246 = pneg %p119
      %p247 = pneg %p116
      %p248 = pneg %p140
      %p249 = pneg %p137
      %p250 = pneg %p166
      %p251 = pneg %p163
      %s252 = smul.u32 16, %s20
      %p253 = scmp.lt.s32.totalorder %s252, 31
      %s254 = scalar_select %p253, %s252, 31
      %s255 = smul.addr %s254, 8
      %s256 = scalar_lea.vmem %s5, %s255
      %s257 = smul.u32 4, %s20
      %s258 = smul.u32 2, %s21
      %p259 = scmp.lt.s32.totalorder %s257, 7
      %s260 = scalar_select %p259, %s257, 7
      %p261 = scmp.lt.s32.totalorder %s258, 1
      %s262 = scalar_select %p261, %s258, 1
      %s263 = smul.addr %s260, 2
      %s264 = sadd.s32 %s262, %s263
      %s265 = smul.addr %s264, 8
      %s266 = scalar_lea.vmem %s0, %s265
      %s267 = smul.u32 4, %s20
      %s268 = smul.u32 2, %s21
      %s269 = smul.u32 16, %s20
      %p270 = scmp.lt.s32.totalorder %s269, 31
      %s271 = scalar_select %p270, %s269, 31
      %s272 = smul.addr %s271, 8
      %s273 = scalar_lea.vmem %s2, %s272
      %s274 = smul.u32 16, %s20
      %s275 = smul.u32 16, %s20
      %p276 = scmp.lt.s32.totalorder %s275, 31
      %s277 = scalar_select %p276, %s275, 31
      %s278 = smul.addr %s277, 8
      %s279 = scalar_lea.vmem %s5, %s278
      %s280 = smul.u32 16, %s20
      %p281 = scmp.eq.s32.totalorder %s21, 0
      // Predicated region
      $region41: #{sage_forward.5} parent=39 // pred_check
        %p282 = pneg %p281
      $region42: #{sage_forward.5} parent=39 // pred_check_branch
        %284 = sbr.rel (%p282) target = $region44
      $region43: #{sage_forward.5} parent=39 // pred_region
        %285 = vst [vmem:[#allocation2] sm:$0xff] 0.0
        %286 = vst [vmem:[#allocation2 + $0x8] sm:$0xff] 0.0
        %287 = vst [vmem:[#allocation2 + $0x10] sm:$0xff] 0.0
        %288 = vst [vmem:[#allocation2 + $0x18] sm:$0xff] 0.0
        %289 = vst [vmem:[#allocation2 + $0x20] sm:$0xff] 0.0
        %290 = vst [vmem:[#allocation2 + $0x28] sm:$0xff] 0.0
        %291 = vst [vmem:[#allocation2 + $0x30] sm:$0xff] 0.0
        %292 = vst [vmem:[#allocation2 + $0x38] sm:$0xff] 0.0
        %293 = vst [vmem:[#allocation2 + $0x40] sm:$0xff] 0.0
        %294 = vst [vmem:[#allocation2 + $0x48] sm:$0xff] 0.0
        %295 = vst [vmem:[#allocation2 + $0x50] sm:$0xff] 0.0
        %296 = vst [vmem:[#allocation2 + $0x58] sm:$0xff] 0.0
        %297 = vst [vmem:[#allocation2 + $0x60] sm:$0xff] 0.0
        %298 = vst [vmem:[#allocation2 + $0x68] sm:$0xff] 0.0
        %299 = vst [vmem:[#allocation2 + $0x70] sm:$0xff] 0.0
        %300 = vst [vmem:[#allocation2 + $0x78] sm:$0xff] 0.0
      $region44: #{sage_forward.5} parent=39 // pred_fallthru
        _
      %s301 = smul.u32 %s21, 256
      %v302 = vld [vmem:[#allocation2] sm:$0xff]
      %v303 = vld [vmem:[#allocation2 + $0x8] sm:$0xff]
      %v304 = vld [vmem:[#allocation2 + $0x10] sm:$0xff]
      %v305 = vld [vmem:[#allocation2 + $0x18] sm:$0xff]
      %v306 = vld [vmem:[#allocation2 + $0x20] sm:$0xff]
      %v307 = vld [vmem:[#allocation2 + $0x28] sm:$0xff]
      %v308 = vld [vmem:[#allocation2 + $0x30] sm:$0xff]
      %v309 = vld [vmem:[#allocation2 + $0x38] sm:$0xff]
      %v310 = vld [vmem:[#allocation2 + $0x40] sm:$0xff]
      %v311 = vld [vmem:[#allocation2 + $0x48] sm:$0xff]
      %v312 = vld [vmem:[#allocation2 + $0x50] sm:$0xff]
      %v313 = vld [vmem:[#allocation2 + $0x58] sm:$0xff]
      %v314 = vld [vmem:[#allocation2 + $0x60] sm:$0xff]
      %v315 = vld [vmem:[#allocation2 + $0x68] sm:$0xff]
      %v316 = vld [vmem:[#allocation2 + $0x70] sm:$0xff]
      %v317 = vld [vmem:[#allocation2 + $0x78] sm:$0xff]
      %v318 = vld [vmem:[%s266] sm:$0xff]
      %v319 = vld [vmem:[%s266 + $0x8] sm:$0xff]
      %v320 = vld [vmem:[%s266 + $0x10] sm:$0xff]
      %v321 = vld [vmem:[%s266 + $0x18] sm:$0xff]
      %v322 = vld [vmem:[%s266 + $0x20] sm:$0xff]
      %v323 = vld [vmem:[%s266 + $0x28] sm:$0xff]
      %v324 = vld [vmem:[%s266 + $0x30] sm:$0xff]
      %v325 = vld [vmem:[%s266 + $0x38] sm:$0xff]
      %v326 = vunpack.c.0.s8 %v318
      %v327 = vunpack.c.0.s8 %v319
      %v328 = vunpack.c.1.s8 %v318
      %v329 = vunpack.c.1.s8 %v319
      %v330 = vunpack.c.2.s8 %v318
      %v331 = vunpack.c.2.s8 %v319
      %v332 = vunpack.c.3.s8 %v318
      %v333 = vunpack.c.3.s8 %v319
      %v334 = vunpack.c.0.s8 %v320
      %v335 = vunpack.c.0.s8 %v321
      %v336 = vunpack.c.1.s8 %v320
      %v337 = vunpack.c.1.s8 %v321
      %v338 = vunpack.c.2.s8 %v320
      %v339 = vunpack.c.2.s8 %v321
      %v340 = vunpack.c.3.s8 %v320
      %v341 = vunpack.c.3.s8 %v321
      %v342 = vunpack.c.0.s8 %v322
      %v343 = vunpack.c.0.s8 %v323
      %v344 = vunpack.c.1.s8 %v322
      %v345 = vunpack.c.1.s8 %v323
      %v346 = vunpack.c.2.s8 %v322
      %v347 = vunpack.c.2.s8 %v323
      %v348 = vunpack.c.3.s8 %v322
      %v349 = vunpack.c.3.s8 %v323
      %v350 = vunpack.c.0.s8 %v324
      %v351 = vunpack.c.0.s8 %v325
      %v352 = vunpack.c.1.s8 %v324
      %v353 = vunpack.c.1.s8 %v325
      %v354 = vunpack.c.2.s8 %v324
      %v355 = vunpack.c.2.s8 %v325
      %v356 = vunpack.c.3.s8 %v324
      %v357 = vunpack.c.3.s8 %v325
      %v358 = vcvt.s32.f32 %v326
      %v359 = vcvt.s32.f32 %v327
      %v360 = vcvt.s32.f32 %v328
      %v361 = vcvt.s32.f32 %v329
      %v362 = vcvt.s32.f32 %v330
      %v363 = vcvt.s32.f32 %v331
      %v364 = vcvt.s32.f32 %v332
      %v365 = vcvt.s32.f32 %v333
      %v366 = vcvt.s32.f32 %v334
      %v367 = vcvt.s32.f32 %v335
      %v368 = vcvt.s32.f32 %v336
      %v369 = vcvt.s32.f32 %v337
      %v370 = vcvt.s32.f32 %v338
      %v371 = vcvt.s32.f32 %v339
      %v372 = vcvt.s32.f32 %v340
      %v373 = vcvt.s32.f32 %v341
      %v374 = vcvt.s32.f32 %v342
      %v375 = vcvt.s32.f32 %v343
      %v376 = vcvt.s32.f32 %v344
      %v377 = vcvt.s32.f32 %v345
      %v378 = vcvt.s32.f32 %v346
      %v379 = vcvt.s32.f32 %v347
      %v380 = vcvt.s32.f32 %v348
      %v381 = vcvt.s32.f32 %v349
      %v382 = vcvt.s32.f32 %v350
      %v383 = vcvt.s32.f32 %v351
      %v384 = vcvt.s32.f32 %v352
      %v385 = vcvt.s32.f32 %v353
      %v386 = vcvt.s32.f32 %v354
      %v387 = vcvt.s32.f32 %v355
      %v388 = vcvt.s32.f32 %v356
      %v389 = vcvt.s32.f32 %v357
      %v390 = vpack.c.bf16 %v360, %v358
      %v391 = vpack.c.bf16 %v361, %v359
      %v392 = vpack.c.bf16 %v364, %v362
      %v393 = vpack.c.bf16 %v365, %v363
      %v394 = vpack.c.bf16 %v368, %v366
      %v395 = vpack.c.bf16 %v369, %v367
      %v396 = vpack.c.bf16 %v372, %v370
      %v397 = vpack.c.bf16 %v373, %v371
      %v398 = vpack.c.bf16 %v376, %v374
      %v399 = vpack.c.bf16 %v377, %v375
      %v400 = vpack.c.bf16 %v380, %v378
      %v401 = vpack.c.bf16 %v381, %v379
      %v402 = vpack.c.bf16 %v384, %v382
      %v403 = vpack.c.bf16 %v385, %v383
      %v404 = vpack.c.bf16 %v388, %v386
      %v405 = vpack.c.bf16 %v389, %v387
      %s406 = sshra.s32 %s301, 3
      %s407 = sand.u32 %s301, 7
      %s408 = smul.addr %s406, 4
      %s409 = scalar_lea.vmem %s1, %s408
      %v410 = vld [vmem:[%s409] sm:$0xf]
      %v411 = vld [vmem:[%s409 + $0x4] sm:$0xf]
      %v412 = vld [vmem:[%s409 + $0x8] sm:$0xf]
      %v413 = vld [vmem:[%s409 + $0xc] sm:$0xf]
      %v414 = vld [vmem:[%s409 + $0x10] sm:$0xf]
      %v415 = vld [vmem:[%s409 + $0x14] sm:$0xf]
      %v416 = vld [vmem:[%s409 + $0x18] sm:$0xf]
      %v417 = vld [vmem:[%s409 + $0x1c] sm:$0xf]
      %v418 = vld [vmem:[%s409 + $0x20] sm:$0xf]
      %v419 = vld [vmem:[%s409 + $0x24] sm:$0xf]
      %v420 = vld [vmem:[%s409 + $0x28] sm:$0xf]
      %v421 = vld [vmem:[%s409 + $0x2c] sm:$0xf]
      %v422 = vld [vmem:[%s409 + $0x30] sm:$0xf]
      %v423 = vld [vmem:[%s409 + $0x34] sm:$0xf]
      %v424 = vld [vmem:[%s409 + $0x38] sm:$0xf]
      %v425 = vld [vmem:[%s409 + $0x3c] sm:$0xf]
      %v426 = vld [vmem:[%s409 + $0x40] sm:$0xf]
      %v427 = vld [vmem:[%s409 + $0x44] sm:$0xf]
      %v428 = vld [vmem:[%s409 + $0x48] sm:$0xf]
      %v429 = vld [vmem:[%s409 + $0x4c] sm:$0xf]
      %v430 = vld [vmem:[%s409 + $0x50] sm:$0xf]
      %v431 = vld [vmem:[%s409 + $0x54] sm:$0xf]
      %v432 = vld [vmem:[%s409 + $0x58] sm:$0xf]
      %v433 = vld [vmem:[%s409 + $0x5c] sm:$0xf]
      %v434 = vld [vmem:[%s409 + $0x60] sm:$0xf]
      %v435 = vld [vmem:[%s409 + $0x64] sm:$0xf]
      %v436 = vld [vmem:[%s409 + $0x68] sm:$0xf]
      %v437 = vld [vmem:[%s409 + $0x6c] sm:$0xf]
      %v438 = vld [vmem:[%s409 + $0x70] sm:$0xf]
      %v439 = vld [vmem:[%s409 + $0x74] sm:$0xf]
      %v440 = vld [vmem:[%s409 + $0x78] sm:$0xf]
      %v441 = vld [vmem:[%s409 + $0x7c] sm:$0xf]
      %v474 = vunpack.c.l.b16 %v410
      %v475 = vunpack.c.l.b16 %v411
      %v476 = vunpack.c.l.b16 %v412
      %v477 = vunpack.c.l.b16 %v413
      %v478 = vunpack.c.l.b16 %v414
      %v479 = vunpack.c.l.b16 %v415
      %v480 = vunpack.c.l.b16 %v416
      %v481 = vunpack.c.l.b16 %v417
      %v482 = vunpack.c.l.b16 %v418
      %v483 = vunpack.c.l.b16 %v419
      %v484 = vunpack.c.l.b16 %v420
      %v485 = vunpack.c.l.b16 %v421
      %v486 = vunpack.c.l.b16 %v422
      %v487 = vunpack.c.l.b16 %v423
      %v488 = vunpack.c.l.b16 %v424
      %v489 = vunpack.c.l.b16 %v425
      %v490 = vunpack.c.l.b16 %v426
      %v491 = vunpack.c.l.b16 %v427
      %v492 = vunpack.c.l.b16 %v428
      %v493 = vunpack.c.l.b16 %v429
      %v494 = vunpack.c.l.b16 %v430
      %v495 = vunpack.c.l.b16 %v431
      %v496 = vunpack.c.l.b16 %v432
      %v497 = vunpack.c.l.b16 %v433
      %v498 = vunpack.c.l.b16 %v434
      %v499 = vunpack.c.l.b16 %v435
      %v500 = vunpack.c.l.b16 %v436
      %v501 = vunpack.c.l.b16 %v437
      %v502 = vunpack.c.l.b16 %v438
      %v503 = vunpack.c.l.b16 %v439
      %v504 = vunpack.c.l.b16 %v440
      %v505 = vunpack.c.l.b16 %v441
      %v506 = vpack.c.b16 %v475, %v474
      %v507 = vpack.c.b16 %v477, %v476
      %v508 = vpack.c.b16 %v479, %v478
      %v509 = vpack.c.b16 %v481, %v480
      %v510 = vpack.c.b16 %v483, %v482
      %v511 = vpack.c.b16 %v485, %v484
      %v512 = vpack.c.b16 %v487, %v486
      %v513 = vpack.c.b16 %v489, %v488
      %v514 = vpack.c.b16 %v491, %v490
      %v515 = vpack.c.b16 %v493, %v492
      %v516 = vpack.c.b16 %v495, %v494
      %v517 = vpack.c.b16 %v497, %v496
      %v518 = vpack.c.b16 %v499, %v498
      %v519 = vpack.c.b16 %v501, %v500
      %v520 = vpack.c.b16 %v503, %v502
      %v521 = vpack.c.b16 %v505, %v504
      %538 = vmatpush.bf16.msra.mxu0 %v513
      %539 = vmatpush.bf16.msra.mxu0 %v512
      %540 = vmatpush.bf16.msra.mxu0 %v511
      %541 = vmatpush.bf16.msra.mxu0 %v510
      %542 = vmatpush.bf16.msra.mxu0 %v509
      %543 = vmatpush.bf16.msra.mxu0 %v508
      %544 = vmatpush.bf16.msra.mxu0 %v507
      %545 = vmatpush.bf16.msra.mxu0 %v506
      %546 = vmatmul.bf16.gmra.mxu0 %v390
      %v547 = vpop.f32.mrf.mxu0
      %v548 = vadd.f32 0.0, %v547
      %v549 = vpop.f32.mrf.mxu0
      %v550 = vadd.f32 0.0, %v549
      %551 = vmatmul.bf16.gmra.mxu0 %v392
      %v552 = vpop.f32.mrf.mxu0
      %v553 = vadd.f32 0.0, %v552
      %v554 = vpop.f32.mrf.mxu0
      %v555 = vadd.f32 0.0, %v554
      %556 = vmatmul.bf16.gmra.mxu0 %v394
      %v557 = vpop.f32.mrf.mxu0
      %v558 = vadd.f32 0.0, %v557
      %v559 = vpop.f32.mrf.mxu0
      %v560 = vadd.f32 0.0, %v559
      %561 = vmatmul.bf16.gmra.mxu0 %v396
      %v562 = vpop.f32.mrf.mxu0
      %v563 = vadd.f32 0.0, %v562
      %v564 = vpop.f32.mrf.mxu0
      %v565 = vadd.f32 0.0, %v564
      %566 = vmatmul.bf16.gmra.mxu0 %v398
      %v567 = vpop.f32.mrf.mxu0
      %v568 = vadd.f32 0.0, %v567
      %v569 = vpop.f32.mrf.mxu0
      %v570 = vadd.f32 0.0, %v569
      %571 = vmatmul.bf16.gmra.mxu0 %v400
      %v572 = vpop.f32.mrf.mxu0
      %v573 = vadd.f32 0.0, %v572
      %v574 = vpop.f32.mrf.mxu0
      %v575 = vadd.f32 0.0, %v574
      %576 = vmatmul.bf16.gmra.mxu0 %v402
      %v577 = vpop.f32.mrf.mxu0
      %v578 = vadd.f32 0.0, %v577
      %v579 = vpop.f32.mrf.mxu0
      %v580 = vadd.f32 0.0, %v579
      %581 = vmatmul.bf16.gmra.mxu0 %v404
      %v582 = vpop.f32.mrf.mxu0
      %v583 = vadd.f32 0.0, %v582
      %v584 = vpop.f32.mrf.mxu0
      %v585 = vadd.f32 0.0, %v584
      %586 = vdwg.mxu0
      %587 = vmatpush.bf16.msra.mxu0 %v521
      %588 = vmatpush.bf16.msra.mxu0 %v520
      %589 = vmatpush.bf16.msra.mxu0 %v519
      %590 = vmatpush.bf16.msra.mxu0 %v518
      %591 = vmatpush.bf16.msra.mxu0 %v517
      %592 = vmatpush.bf16.msra.mxu0 %v516
      %593 = vmatpush.bf16.msra.mxu0 %v515
      %594 = vmatpush.bf16.msra.mxu0 %v514
      %595 = vmatmul.bf16.gmra.mxu0 %v391
      %v596 = vpop.f32.mrf.mxu0
      %v597 = vadd.f32 %v548, %v596
      %v598 = vpop.f32.mrf.mxu0
      %v599 = vadd.f32 %v550, %v598
      %600 = vmatmul.bf16.gmra.mxu0 %v393
      %v601 = vpop.f32.mrf.mxu0
      %v602 = vadd.f32 %v553, %v601
      %v603 = vpop.f32.mrf.mxu0
      %v604 = vadd.f32 %v555, %v603
      %605 = vmatmul.bf16.gmra.mxu0 %v395
      %v606 = vpop.f32.mrf.mxu0
      %v607 = vadd.f32 %v558, %v606
      %v608 = vpop.f32.mrf.mxu0
      %v609 = vadd.f32 %v560, %v608
      %610 = vmatmul.bf16.gmra.mxu0 %v397
      %v611 = vpop.f32.mrf.mxu0
      %v612 = vadd.f32 %v563, %v611
      %v613 = vpop.f32.mrf.mxu0
      %v614 = vadd.f32 %v565, %v613
      %615 = vmatmul.bf16.gmra.mxu0 %v399
      %v616 = vpop.f32.mrf.mxu0
      %v617 = vadd.f32 %v568, %v616
      %v618 = vpop.f32.mrf.mxu0
      %v619 = vadd.f32 %v570, %v618
      %620 = vmatmul.bf16.gmra.mxu0 %v401
      %v621 = vpop.f32.mrf.mxu0
      %v622 = vadd.f32 %v573, %v621
      %v623 = vpop.f32.mrf.mxu0
      %v624 = vadd.f32 %v575, %v623
      %625 = vmatmul.bf16.gmra.mxu0 %v403
      %v626 = vpop.f32.mrf.mxu0
      %v627 = vadd.f32 %v578, %v626
      %v628 = vpop.f32.mrf.mxu0
      %v629 = vadd.f32 %v580, %v628
      %630 = vmatmul.bf16.gmra.mxu0 %v405
      %v631 = vpop.f32.mrf.mxu0
      %v632 = vadd.f32 %v583, %v631
      %v633 = vpop.f32.mrf.mxu0
      %v634 = vadd.f32 %v585, %v633
      %635 = vdwg.mxu0
      %v636 = vadd.f32 %v302, %v597
      %v637 = vadd.f32 %v303, %v599
      %v638 = vadd.f32 %v304, %v602
      %v639 = vadd.f32 %v305, %v604
      %v640 = vadd.f32 %v306, %v607
      %v641 = vadd.f32 %v307, %v609
      %v642 = vadd.f32 %v308, %v612
      %v643 = vadd.f32 %v309, %v614
      %v644 = vadd.f32 %v310, %v617
      %v645 = vadd.f32 %v311, %v619
      %v646 = vadd.f32 %v312, %v622
      %v647 = vadd.f32 %v313, %v624
      %v648 = vadd.f32 %v314, %v627
      %v649 = vadd.f32 %v315, %v629
      %v650 = vadd.f32 %v316, %v632
      %v651 = vadd.f32 %v317, %v634
      %652 = vst [vmem:[#allocation2] sm:$0xff] %v636
      %653 = vst [vmem:[#allocation2 + $0x8] sm:$0xff] %v637
      %654 = vst [vmem:[#allocation2 + $0x10] sm:$0xff] %v638
      %655 = vst [vmem:[#allocation2 + $0x18] sm:$0xff] %v639
      %656 = vst [vmem:[#allocation2 + $0x20] sm:$0xff] %v640
      %657 = vst [vmem:[#allocation2 + $0x28] sm:$0xff] %v641
      %658 = vst [vmem:[#allocation2 + $0x30] sm:$0xff] %v642
      %659 = vst [vmem:[#allocation2 + $0x38] sm:$0xff] %v643
      %660 = vst [vmem:[#allocation2 + $0x40] sm:$0xff] %v644
      %661 = vst [vmem:[#allocation2 + $0x48] sm:$0xff] %v645
      %662 = vst [vmem:[#allocation2 + $0x50] sm:$0xff] %v646
      %663 = vst [vmem:[#allocation2 + $0x58] sm:$0xff] %v647
      %664 = vst [vmem:[#allocation2 + $0x60] sm:$0xff] %v648
      %665 = vst [vmem:[#allocation2 + $0x68] sm:$0xff] %v649
      %666 = vst [vmem:[#allocation2 + $0x70] sm:$0xff] %v650
      %667 = vst [vmem:[#allocation2 + $0x78] sm:$0xff] %v651
      // Predicated region
      $region45: #{sage_forward.5} parent=39 // pred_check
        %p668 = pneg %p281
      $region46: #{sage_forward.5} parent=39 // pred_check_branch
        %670 = sbr.rel (%p668) target = $region48
      $region47: #{sage_forward.5} parent=39 // pred_region
        %v671 = vld [vmem:[#allocation2] sm:$0xff]
        %v672 = vld [vmem:[#allocation2 + $0x8] sm:$0xff]
        %v673 = vld [vmem:[#allocation2 + $0x10] sm:$0xff]
        %v674 = vld [vmem:[#allocation2 + $0x18] sm:$0xff]
        %v675 = vld [vmem:[#allocation2 + $0x20] sm:$0xff]
        %v676 = vld [vmem:[#allocation2 + $0x28] sm:$0xff]
        %v677 = vld [vmem:[#allocation2 + $0x30] sm:$0xff]
        %v678 = vld [vmem:[#allocation2 + $0x38] sm:$0xff]
        %v679 = vld [vmem:[#allocation2 + $0x40] sm:$0xff]
        %v680 = vld [vmem:[#allocation2 + $0x48] sm:$0xff]
        %v681 = vld [vmem:[#allocation2 + $0x50] sm:$0xff]
        %v682 = vld [vmem:[#allocation2 + $0x58] sm:$0xff]
        %v683 = vld [vmem:[#allocation2 + $0x60] sm:$0xff]
        %v684 = vld [vmem:[#allocation2 + $0x68] sm:$0xff]
        %v685 = vld [vmem:[#allocation2 + $0x70] sm:$0xff]
        %v686 = vld [vmem:[#allocation2 + $0x78] sm:$0xff]
        %v687 = vld [vmem:[%s273] sm:$0xff]
        %v688 = vld [vmem:[%s273 + $0x8] sm:$0xff]
        %v689 = vld [vmem:[%s273 + $0x10] sm:$0xff]
        %v690 = vld [vmem:[%s273 + $0x18] sm:$0xff]
        %v691 = vld [vmem:[%s273 + $0x20] sm:$0xff]
        %v692 = vld [vmem:[%s273 + $0x28] sm:$0xff]
        %v693 = vld [vmem:[%s273 + $0x30] sm:$0xff]
        %v694 = vld [vmem:[%s273 + $0x38] sm:$0xff]
        %v695 = vld [vmem:[%s273 + $0x40] sm:$0xff]
        %v696 = vld [vmem:[%s273 + $0x48] sm:$0xff]
        %v697 = vld [vmem:[%s273 + $0x50] sm:$0xff]
        %v698 = vld [vmem:[%s273 + $0x58] sm:$0xff]
        %v699 = vld [vmem:[%s273 + $0x60] sm:$0xff]
        %v700 = vld [vmem:[%s273 + $0x68] sm:$0xff]
        %v701 = vld [vmem:[%s273 + $0x70] sm:$0xff]
        %v702 = vld [vmem:[%s273 + $0x78] sm:$0xff]
        %704 = vset.pattern.permute.xlu0 0
        %705 = vperm.xlu0 %704, %v687
        %v706 = vpop.permute.xlu0 %705
        %709 = vset.pattern.permute.xlu0 0
        %710 = vperm.xlu0 %709, %v688
        %v711 = vpop.permute.xlu0 %710
        %714 = vset.pattern.permute.xlu0 0
        %715 = vperm.xlu0 %714, %v689
        %v716 = vpop.permute.xlu0 %715
        %719 = vset.pattern.permute.xlu0 0
        %720 = vperm.xlu0 %719, %v690
        %v721 = vpop.permute.xlu0 %720
        %724 = vset.pattern.permute.xlu0 0
        %725 = vperm.xlu0 %724, %v691
        %v726 = vpop.permute.xlu0 %725
        %729 = vset.pattern.permute.xlu0 0
        %730 = vperm.xlu0 %729, %v692
        %v731 = vpop.permute.xlu0 %730
        %734 = vset.pattern.permute.xlu0 0
        %735 = vperm.xlu0 %734, %v693
        %v736 = vpop.permute.xlu0 %735
        %739 = vset.pattern.permute.xlu0 0
        %740 = vperm.xlu0 %739, %v694
        %v741 = vpop.permute.xlu0 %740
        %744 = vset.pattern.permute.xlu0 0
        %745 = vperm.xlu0 %744, %v695
        %v746 = vpop.permute.xlu0 %745
        %749 = vset.pattern.permute.xlu0 0
        %750 = vperm.xlu0 %749, %v696
        %v751 = vpop.permute.xlu0 %750
        %754 = vset.pattern.permute.xlu0 0
        %755 = vperm.xlu0 %754, %v697
        %v756 = vpop.permute.xlu0 %755
        %759 = vset.pattern.permute.xlu0 0
        %760 = vperm.xlu0 %759, %v698
        %v761 = vpop.permute.xlu0 %760
        %764 = vset.pattern.permute.xlu0 0
        %765 = vperm.xlu0 %764, %v699
        %v766 = vpop.permute.xlu0 %765
        %769 = vset.pattern.permute.xlu0 0
        %770 = vperm.xlu0 %769, %v700
        %v771 = vpop.permute.xlu0 %770
        %774 = vset.pattern.permute.xlu0 0
        %775 = vperm.xlu0 %774, %v701
        %v776 = vpop.permute.xlu0 %775
        %779 = vset.pattern.permute.xlu0 0
        %780 = vperm.xlu0 %779, %v702
        %v781 = vpop.permute.xlu0 %780
        %v783 = vmul.f32 %v671, %v706
        %v784 = vmul.f32 %v672, %v711
        %v785 = vmul.f32 %v673, %v716
        %v786 = vmul.f32 %v674, %v721
        %v787 = vmul.f32 %v675, %v726
        %v788 = vmul.f32 %v676, %v731
        %v789 = vmul.f32 %v677, %v736
        %v790 = vmul.f32 %v678, %v741
        %v791 = vmul.f32 %v679, %v746
        %v792 = vmul.f32 %v680, %v751
        %v793 = vmul.f32 %v681, %v756
        %v794 = vmul.f32 %v682, %v761
        %v795 = vmul.f32 %v683, %v766
        %v796 = vmul.f32 %v684, %v771
        %v797 = vmul.f32 %v685, %v776
        %v798 = vmul.f32 %v686, %v781
        %s799 = smul.u32 %s20, 128
        %s800 = sshra.s32 %s799, 3
        %s801 = sand.u32 %s799, 7
        %s802 = smul.addr %s800, 4
        %s803 = scalar_lea.vmem %s1, %s802
        %v804 = vld [vmem:[%s803] sm:$0xf]
        %v805 = vld [vmem:[%s803 + $0x4] sm:$0xf]
        %v806 = vld [vmem:[%s803 + $0x8] sm:$0xf]
        %v807 = vld [vmem:[%s803 + $0xc] sm:$0xf]
        %v808 = vld [vmem:[%s803 + $0x10] sm:$0xf]
        %v809 = vld [vmem:[%s803 + $0x14] sm:$0xf]
        %v810 = vld [vmem:[%s803 + $0x18] sm:$0xf]
        %v811 = vld [vmem:[%s803 + $0x1c] sm:$0xf]
        %v812 = vld [vmem:[%s803 + $0x20] sm:$0xf]
        %v813 = vld [vmem:[%s803 + $0x24] sm:$0xf]
        %v814 = vld [vmem:[%s803 + $0x28] sm:$0xf]
        %v815 = vld [vmem:[%s803 + $0x2c] sm:$0xf]
        %v816 = vld [vmem:[%s803 + $0x30] sm:$0xf]
        %v817 = vld [vmem:[%s803 + $0x34] sm:$0xf]
        %v818 = vld [vmem:[%s803 + $0x38] sm:$0xf]
        %v819 = vld [vmem:[%s803 + $0x3c] sm:$0xf]
        %v820 = vpack.c.bf16 %v784, %v783
        %v821 = vpack.c.bf16 %v786, %v785
        %v822 = vpack.c.bf16 %v788, %v787
        %v823 = vpack.c.bf16 %v790, %v789
        %v824 = vpack.c.bf16 %v792, %v791
        %v825 = vpack.c.bf16 %v794, %v793
        %v826 = vpack.c.bf16 %v796, %v795
        %v827 = vpack.c.bf16 %v798, %v797
        %v828 = vld [vmem:[%s3] sm:$0xf]
        %v829 = vld [vmem:[%s3 + $0x4] sm:$0xf]
        %v830 = vld [vmem:[%s3 + $0x8] sm:$0xf]
        %v831 = vld [vmem:[%s3 + $0xc] sm:$0xf]
        %v832 = vld [vmem:[%s3 + $0x10] sm:$0xf]
        %v833 = vld [vmem:[%s3 + $0x14] sm:$0xf]
        %v834 = vld [vmem:[%s3 + $0x18] sm:$0xf]
        %v835 = vld [vmem:[%s3 + $0x1c] sm:$0xf]
        %v836 = vld [vmem:[%s3 + $0x20] sm:$0xf]
        %v837 = vld [vmem:[%s3 + $0x24] sm:$0xf]
        %v838 = vld [vmem:[%s3 + $0x28] sm:$0xf]
        %v839 = vld [vmem:[%s3 + $0x2c] sm:$0xf]
        %v840 = vld [vmem:[%s3 + $0x30] sm:$0xf]
        %v841 = vld [vmem:[%s3 + $0x34] sm:$0xf]
        %v842 = vld [vmem:[%s3 + $0x38] sm:$0xf]
        %v843 = vld [vmem:[%s3 + $0x3c] sm:$0xf]
        %v844 = vld [vmem:[%s3 + $0x40] sm:$0xf]
        %v845 = vld [vmem:[%s3 + $0x44] sm:$0xf]
        %v846 = vld [vmem:[%s3 + $0x48] sm:$0xf]
        %v847 = vld [vmem:[%s3 + $0x4c] sm:$0xf]
        %v848 = vld [vmem:[%s3 + $0x50] sm:$0xf]
        %v849 = vld [vmem:[%s3 + $0x54] sm:$0xf]
        %v850 = vld [vmem:[%s3 + $0x58] sm:$0xf]
        %v851 = vld [vmem:[%s3 + $0x5c] sm:$0xf]
        %v852 = vld [vmem:[%s3 + $0x60] sm:$0xf]
        %v853 = vld [vmem:[%s3 + $0x64] sm:$0xf]
        %v854 = vld [vmem:[%s3 + $0x68] sm:$0xf]
        %v855 = vld [vmem:[%s3 + $0x6c] sm:$0xf]
        %v856 = vld [vmem:[%s3 + $0x70] sm:$0xf]
        %v857 = vld [vmem:[%s3 + $0x74] sm:$0xf]
        %v858 = vld [vmem:[%s3 + $0x78] sm:$0xf]
        %v859 = vld [vmem:[%s3 + $0x7c] sm:$0xf]
        %v876 = vunpack.c.l.b16 %v804
        %v877 = vunpack.c.l.b16 %v805
        %v878 = vunpack.c.l.b16 %v806
        %v879 = vunpack.c.l.b16 %v807
        %v880 = vunpack.c.l.b16 %v808
        %v881 = vunpack.c.l.b16 %v809
        %v882 = vunpack.c.l.b16 %v810
        %v883 = vunpack.c.l.b16 %v811
        %v884 = vunpack.c.l.b16 %v812
        %v885 = vunpack.c.l.b16 %v813
        %v886 = vunpack.c.l.b16 %v814
        %v887 = vunpack.c.l.b16 %v815
        %v888 = vunpack.c.l.b16 %v816
        %v889 = vunpack.c.l.b16 %v817
        %v890 = vunpack.c.l.b16 %v818
        %v891 = vunpack.c.l.b16 %v819
        %v892 = vpack.c.b16 %v877, %v876
        %v893 = vpack.c.b16 %v879, %v878
        %v894 = vpack.c.b16 %v881, %v880
        %v895 = vpack.c.b16 %v883, %v882
        %v896 = vpack.c.b16 %v885, %v884
        %v897 = vpack.c.b16 %v887, %v886
        %v898 = vpack.c.b16 %v889, %v888
        %v899 = vpack.c.b16 %v891, %v890
        %v924 = vunpack.c.l.b16 %v844
        %v925 = vunpack.c.l.b16 %v845
        %v926 = vunpack.c.l.b16 %v846
        %v927 = vunpack.c.l.b16 %v847
        %v928 = vunpack.c.l.b16 %v848
        %v929 = vunpack.c.l.b16 %v849
        %v930 = vunpack.c.l.b16 %v850
        %v931 = vunpack.c.l.b16 %v851
        %v932 = vunpack.c.l.b16 %v852
        %v933 = vunpack.c.l.b16 %v853
        %v934 = vunpack.c.l.b16 %v854
        %v935 = vunpack.c.l.b16 %v855
        %v936 = vunpack.c.l.b16 %v856
        %v937 = vunpack.c.l.b16 %v857
        %v938 = vunpack.c.l.b16 %v858
        %v939 = vunpack.c.l.b16 %v859
        %v940 = vpack.c.b16 %v925, %v924
        %v941 = vpack.c.b16 %v927, %v926
        %v942 = vpack.c.b16 %v929, %v928
        %v943 = vpack.c.b16 %v931, %v930
        %v944 = vpack.c.b16 %v933, %v932
        %v945 = vpack.c.b16 %v935, %v934
        %v946 = vpack.c.b16 %v937, %v936
        %v947 = vpack.c.b16 %v939, %v938
        %956 = vmatpush.bf16.msra.mxu0 %v947
        %957 = vmatpush.bf16.msra.mxu0 %v946
        %958 = vmatpush.bf16.msra.mxu0 %v945
        %959 = vmatpush.bf16.msra.mxu0 %v944
        %960 = vmatpush.bf16.msra.mxu0 %v943
        %961 = vmatpush.bf16.msra.mxu0 %v942
        %962 = vmatpush.bf16.msra.mxu0 %v941
        %963 = vmatpush.bf16.msra.mxu0 %v940
        %964 = vmatmul.bf16.gmra.mxu0 %v892
        %v965 = vpop.f32.mrf.mxu0
        %v966 = vadd.f32 0.0, %v965
        %v967 = vpop.f32.mrf.mxu0
        %v968 = vadd.f32 0.0, %v967
        %969 = vmatmul.bf16.gmra.mxu0 %v893
        %v970 = vpop.f32.mrf.mxu0
        %v971 = vadd.f32 0.0, %v970
        %v972 = vpop.f32.mrf.mxu0
        %v973 = vadd.f32 0.0, %v972
        %974 = vmatmul.bf16.gmra.mxu0 %v894
        %v975 = vpop.f32.mrf.mxu0
        %v976 = vadd.f32 0.0, %v975
        %v977 = vpop.f32.mrf.mxu0
        %v978 = vadd.f32 0.0, %v977
        %979 = vmatmul.bf16.gmra.mxu0 %v895
        %v980 = vpop.f32.mrf.mxu0
        %v981 = vadd.f32 0.0, %v980
        %v982 = vpop.f32.mrf.mxu0
        %v983 = vadd.f32 0.0, %v982
        %984 = vmatmul.bf16.gmra.mxu0 %v896
        %v985 = vpop.f32.mrf.mxu0
        %v986 = vadd.f32 0.0, %v985
        %v987 = vpop.f32.mrf.mxu0
        %v988 = vadd.f32 0.0, %v987
        %989 = vmatmul.bf16.gmra.mxu0 %v897
        %v990 = vpop.f32.mrf.mxu0
        %v991 = vadd.f32 0.0, %v990
        %v992 = vpop.f32.mrf.mxu0
        %v993 = vadd.f32 0.0, %v992
        %994 = vmatmul.bf16.gmra.mxu0 %v898
        %v995 = vpop.f32.mrf.mxu0
        %v996 = vadd.f32 0.0, %v995
        %v997 = vpop.f32.mrf.mxu0
        %v998 = vadd.f32 0.0, %v997
        %999 = vmatmul.bf16.gmra.mxu0 %v899
        %v1000 = vpop.f32.mrf.mxu0
        %v1001 = vadd.f32 0.0, %v1000
        %v1002 = vpop.f32.mrf.mxu0
        %v1003 = vadd.f32 0.0, %v1002
        %1004 = vdwg.mxu0
        %v1021 = vunpack.c.l.b16 %v828
        %v1022 = vunpack.c.l.b16 %v829
        %v1023 = vunpack.c.l.b16 %v830
        %v1024 = vunpack.c.l.b16 %v831
        %v1025 = vunpack.c.l.b16 %v832
        %v1026 = vunpack.c.l.b16 %v833
        %v1027 = vunpack.c.l.b16 %v834
        %v1028 = vunpack.c.l.b16 %v835
        %v1029 = vunpack.c.l.b16 %v836
        %v1030 = vunpack.c.l.b16 %v837
        %v1031 = vunpack.c.l.b16 %v838
        %v1032 = vunpack.c.l.b16 %v839
        %v1033 = vunpack.c.l.b16 %v840
        %v1034 = vunpack.c.l.b16 %v841
        %v1035 = vunpack.c.l.b16 %v842
        %v1036 = vunpack.c.l.b16 %v843
        %v1037 = vpack.c.b16 %v1022, %v1021
        %v1038 = vpack.c.b16 %v1024, %v1023
        %v1039 = vpack.c.b16 %v1026, %v1025
        %v1040 = vpack.c.b16 %v1028, %v1027
        %v1041 = vpack.c.b16 %v1030, %v1029
        %v1042 = vpack.c.b16 %v1032, %v1031
        %v1043 = vpack.c.b16 %v1034, %v1033
        %v1044 = vpack.c.b16 %v1036, %v1035
        %1053 = vmatpush.bf16.msra.mxu0 %v1044
        %1054 = vmatpush.bf16.msra.mxu0 %v1043
        %1055 = vmatpush.bf16.msra.mxu0 %v1042
        %1056 = vmatpush.bf16.msra.mxu0 %v1041
        %1057 = vmatpush.bf16.msra.mxu0 %v1040
        %1058 = vmatpush.bf16.msra.mxu0 %v1039
        %1059 = vmatpush.bf16.msra.mxu0 %v1038
        %1060 = vmatpush.bf16.msra.mxu0 %v1037
        %1061 = vmatmul.bf16.gmra.mxu0 %v820
        %v1062 = vpop.f32.mrf.mxu0
        %v1063 = vadd.f32 %v966, %v1062
        %v1064 = vpop.f32.mrf.mxu0
        %v1065 = vadd.f32 %v968, %v1064
        %1066 = vmatmul.bf16.gmra.mxu0 %v821
        %v1067 = vpop.f32.mrf.mxu0
        %v1068 = vadd.f32 %v971, %v1067
        %v1069 = vpop.f32.mrf.mxu0
        %v1070 = vadd.f32 %v973, %v1069
        %1071 = vmatmul.bf16.gmra.mxu0 %v822
        %v1072 = vpop.f32.mrf.mxu0
        %v1073 = vadd.f32 %v976, %v1072
        %v1074 = vpop.f32.mrf.mxu0
        %v1075 = vadd.f32 %v978, %v1074
        %1076 = vmatmul.bf16.gmra.mxu0 %v823
        %v1077 = vpop.f32.mrf.mxu0
        %v1078 = vadd.f32 %v981, %v1077
        %v1079 = vpop.f32.mrf.mxu0
        %v1080 = vadd.f32 %v983, %v1079
        %1081 = vmatmul.bf16.gmra.mxu0 %v824
        %v1082 = vpop.f32.mrf.mxu0
        %v1083 = vadd.f32 %v986, %v1082
        %v1084 = vpop.f32.mrf.mxu0
        %v1085 = vadd.f32 %v988, %v1084
        %1086 = vmatmul.bf16.gmra.mxu0 %v825
        %v1087 = vpop.f32.mrf.mxu0
        %v1088 = vadd.f32 %v991, %v1087
        %v1089 = vpop.f32.mrf.mxu0
        %v1090 = vadd.f32 %v993, %v1089
        %1091 = vmatmul.bf16.gmra.mxu0 %v826
        %v1092 = vpop.f32.mrf.mxu0
        %v1093 = vadd.f32 %v996, %v1092
        %v1094 = vpop.f32.mrf.mxu0
        %v1095 = vadd.f32 %v998, %v1094
        %1096 = vmatmul.bf16.gmra.mxu0 %v827
        %v1097 = vpop.f32.mrf.mxu0
        %v1098 = vadd.f32 %v1001, %v1097
        %v1099 = vpop.f32.mrf.mxu0
        %v1100 = vadd.f32 %v1003, %v1099
        %1101 = vdwg.mxu0
        %v1102 = vld [vmem:[%s4] sm:$0x1]
        %v1104 = vperm.slane %v1102, 0
        %v1106 = vadd.f32 %v1063, %v1104
        %v1107 = vadd.f32 %v1065, %v1104
        %v1108 = vadd.f32 %v1068, %v1104
        %v1109 = vadd.f32 %v1070, %v1104
        %v1110 = vadd.f32 %v1073, %v1104
        %v1111 = vadd.f32 %v1075, %v1104
        %v1112 = vadd.f32 %v1078, %v1104
        %v1113 = vadd.f32 %v1080, %v1104
        %v1114 = vadd.f32 %v1083, %v1104
        %v1115 = vadd.f32 %v1085, %v1104
        %v1116 = vadd.f32 %v1088, %v1104
        %v1117 = vadd.f32 %v1090, %v1104
        %v1118 = vadd.f32 %v1093, %v1104
        %v1119 = vadd.f32 %v1095, %v1104
        %v1120 = vadd.f32 %v1098, %v1104
        %v1121 = vadd.f32 %v1100, %v1104
        %1122 = vst [vmem:[%s279] sm:$0xff] %v1106
        %1123 = vst [vmem:[%s279 + $0x8] sm:$0xff] %v1107
        %1124 = vst [vmem:[%s279 + $0x10] sm:$0xff] %v1108
        %1125 = vst [vmem:[%s279 + $0x18] sm:$0xff] %v1109
        %1126 = vst [vmem:[%s279 + $0x20] sm:$0xff] %v1110
        %1127 = vst [vmem:[%s279 + $0x28] sm:$0xff] %v1111
        %1128 = vst [vmem:[%s279 + $0x30] sm:$0xff] %v1112
        %1129 = vst [vmem:[%s279 + $0x38] sm:$0xff] %v1113
        %1130 = vst [vmem:[%s279 + $0x40] sm:$0xff] %v1114
        %1131 = vst [vmem:[%s279 + $0x48] sm:$0xff] %v1115
        %1132 = vst [vmem:[%s279 + $0x50] sm:$0xff] %v1116
        %1133 = vst [vmem:[%s279 + $0x58] sm:$0xff] %v1117
        %1134 = vst [vmem:[%s279 + $0x60] sm:$0xff] %v1118
        %1135 = vst [vmem:[%s279 + $0x68] sm:$0xff] %v1119
        %1136 = vst [vmem:[%s279 + $0x70] sm:$0xff] %v1120
        %1137 = vst [vmem:[%s279 + $0x78] sm:$0xff] %v1121
      $region48: #{sage_forward.5} parent=39 // pred_fallthru
        _
      %s1138 = smul.u32 16, %s20
      %p1139 = scmp.lt.s32.totalorder %s1138, 31
      %s1140 = scalar_select %p1139, %s1138, 31
      %s1141 = smul.addr %s1140, 8
      %s1142 = scalar_lea.vmem %s5, %s1141
      // Predicated region
      $region49: #{sage_forward.5} parent=39 // pred_check
        %p1143 = pneg %p163
      $region50: #{sage_forward.5} parent=39 // pred_check_branch
        %1145 = sbr.rel (%p1143) target = $region52
      $region51: #{sage_forward.5} parent=39 // pred_region
        %s1146 = smul.u32 16, %s20
      $region52: #{sage_forward.5} parent=39 // pred_fallthru
        _
    $region40: #{sage_forward.5} parent=5 // pred_fallthru
      _
    %p1147 = scmp.le.s32.totalorder 2, %s11
    // Predicated region
    $region53: #{sage_forward.5} parent=5 // pred_check
      %p1148 = pneg %p1147
    $region54: #{sage_forward.5} parent=5 // pred_check_branch
      %1150 = sbr.rel (%p1148) target = $region56
    $region55: #{sage_forward.5} parent=5 // pred_region
      %s1151 = ssub.s32 %s11, 2
      // Predicated region
      $region57: #{sage_forward.5} parent=55 // pred_check
        %p1152 = pneg %p169
      $region58: #{sage_forward.5} parent=55 // pred_check_branch
        %1154 = sbr.rel (%p1152) target = $region60
      $region59: #{sage_forward.5} parent=55 // pred_region
        %s1155 = smul.u32 16, %s22
        %p1156 = scmp.lt.s32.totalorder %s1155, 31
        %s1157 = scalar_select %p1156, %s1155, 31
        %s1158 = smul.addr %s1157, 8
        %s1159 = scalar_lea.vmem %s5, %s1158
      $region60: #{sage_forward.5} parent=55 // pred_fallthru
        _
    $region56: #{sage_forward.5} parent=5 // pred_fallthru
      _
  $region6: #{sage_forward.5} parent=0 // loop_footer
    %s15 = sadd.s32 1, %s11
  $region7: #{sage_forward.5} parent=0 // loop_footer_branch
    %10 = sbr.rel target = $region3
  $region8: #{sage_forward.5} parent=0 // loop_exit
    _

// kernel: sage_forward.3
$region0: #{sage_forward.3}
  #allocation0 [shape = 'u32[]', space=smem, size = 0x4, offset = 0x4, fixed_abs, tag = 'smem constant byte address 0x4 - core index']
  #allocation1 [shape = 'u32[72,128]{1,0:T(1,128)}', space=vmem, size = 0x9000, scoped, tag = 'internal scratch']
  #allocation2 [shape = 'f32[128,128]{1,0:T(8,128)}', space=vmem, size = 0x10000, scoped, tag = 'scratch operand']
  %s0 = inlined_call_operand.vmem [shape: s8[256,256], index: 0, kind: input, shape index: {}]
  %s1 = inlined_call_operand.vmem [shape: bf16[256,128], index: 1, kind: input, shape index: {}]
  %s2 = inlined_call_operand.vmem [shape: f32[256,1], index: 2, kind: input, shape index: {}]
  %s3 = inlined_call_operand.vmem [shape: bf16[256,128], index: 3, kind: input, shape index: {}]
  %s4 = inlined_call_operand.vmem [shape: f32[1,128], index: 4, kind: input, shape index: {}]
  %s5 = inlined_call_operand.vmem [shape: bf16[256,128], index: 5, kind: output, shape index: {}]
  %s6 = sld [smem:[#allocation0]]
  $region61: #{sage_forward.3} parent=0
    _
  %s8 = ssub.s32 1, %s6
  %s9 = scalar_select 0, %s8, %s6
  loop: start=0, step=1, limit=4
  $region2: #{sage_forward.3} parent=0 // loop_pre_header
    _
  $region3: #{sage_forward.3} parent=0 // loop_header
    %s11 = sphi 0, %s15
    %p12 = scmp.ge.s32.totalorder %s11, 4
    %s18 = sphi 0, %s30
    %s19 = sphi 0, %s26
    %s20 = sphi 0, %s18
    %s21 = sphi 0, %s19
    %s22 = sphi 0, %s20
    %s23 = sphi 0, %s21
    %s35 = sphi 0, %s37
    %s38 = sphi 0, %s35
    %s39 = sphi 0, %s38
    %s55 = sphi 0, %s39
    %s59 = sphi 0, %s59
    %s61 = sphi 0, %s59
    %s62 = sphi 0, %s61
    %s76 = sphi 0, %s62
    %s82 = sphi 0, %s84
    %s85 = sphi 0, %s82
    %s86 = sphi 0, %s85
    %s102 = sphi 0, %s86
    %s106 = sphi 0, %s106
    %s108 = sphi 0, %s106
    %s109 = sphi 0, %s108
    %s123 = sphi 0, %s109
    %s127 = sphi 0, %s127
    %s129 = sphi 0, %s127
    %s130 = sphi 0, %s129
    %s144 = sphi 0, %s130
    %s150 = sphi 0, %s152
    %s153 = sphi 0, %s150
    %s154 = sphi 0, %s153
    %s170 = sphi 0, %s154
  $region4: #{sage_forward.3} parent=0 // loop_header_branch
    %14 = sbr.rel (%p12) target = $region8
  $region5: #{sage_forward.3} parent=0 // loop_body
    %s16 = ssub.s32 %s11, 1
    %s17 = ssub.s32 %s11, 2
    %s24 = sadd.s32 1, %s19
    %p25 = scmp.ge.s32.totalorder %s24, 1
    %s26 = scalar_select %p25, 0, %s24
    %s27 = sadd.s32 1, %s18
    %s28 = scalar_select %p25, %s27, %s18
    %p29 = scmp.ge.s32.totalorder %s28, 2
    %s30 = scalar_select %p29, 0, %s28
    %s31 = ssub.s32 %s18, %s30
    %s32 = ssub.s32 %s19, %s26
    %s33 = sor.u32 %s31, %s32
    %p34 = scmp.eq.s32.totalorder %s33, 0
    %s36 = sadd.s32 %s35, 1
    %s37 = scalar_select %p34, %s35, %s36
    %p40 = pneg %p34
    %p41 = scmp.eq.s32.totalorder %s11, 1
    %p42 = por %p40, %p41
    %p43 = scmp.ne.s32.totalorder %s35, %s38
    %p44 = scmp.eq.s32.totalorder %s11, 0
    %p45 = por %p43, %p44
    %p46 = scmp.ne.s32.totalorder %s35, %s38
    %p47 = scmp.eq.s32.totalorder %s16, 1
    %p48 = por %p46, %p47
    %p49 = scmp.ne.s32.totalorder %s38, %s39
    %p50 = scmp.eq.s32.totalorder %s16, 0
    %p51 = por %p49, %p50
    %p52 = scmp.ne.s32.totalorder %s38, %s39
    %p53 = scmp.eq.s32.totalorder %s17, 1
    %p54 = por %p52, %p53
    %p56 = scmp.ne.s32.totalorder %s39, %s55
    %p57 = scmp.eq.s32.totalorder %s17, 0
    %p58 = por %p56, %p57
    %s60 = sadd.s32 %s59, 1
    %p63 = scmp.eq.s32.totalorder %s11, 1
    %p64 = scmp.ne.s32.totalorder %s59, %s61
    %p65 = scmp.eq.s32.totalorder %s11, 0
    %p66 = por %p64, %p65
    %p67 = scmp.ne.s32.totalorder %s59, %s61
    %p68 = scmp.eq.s32.totalorder %s16, 1
    %p69 = por %p67, %p68
    %p70 = scmp.ne.s32.totalorder %s61, %s62
    %p71 = scmp.eq.s32.totalorder %s16, 0
    %p72 = por %p70, %p71
    %p73 = scmp.ne.s32.totalorder %s61, %s62
    %p74 = scmp.eq.s32.totalorder %s17, 1
    %p75 = por %p73, %p74
    %p77 = scmp.ne.s32.totalorder %s62, %s76
    %p78 = scmp.eq.s32.totalorder %s17, 0
    %p79 = por %p77, %p78
    %s80 = ssub.s32 %s18, %s30
    %p81 = scmp.eq.s32.totalorder %s80, 0
    %s83 = sadd.s32 %s82, 1
    %s84 = scalar_select %p81, %s82, %s83
    %p87 = pneg %p81
    %p88 = scmp.eq.s32.totalorder %s11, 1
    %p89 = por %p87, %p88
    %p90 = scmp.ne.s32.totalorder %s82, %s85
    %p91 = scmp.eq.s32.totalorder %s11, 0
    %p92 = por %p90, %p91
    %p93 = scmp.ne.s32.totalorder %s82, %s85
    %p94 = scmp.eq.s32.totalorder %s16, 1
    %p95 = por %p93, %p94
    %p96 = scmp.ne.s32.totalorder %s85, %s86
    %p97 = scmp.eq.s32.totalorder %s16, 0
    %p98 = por %p96, %p97
    %p99 = scmp.ne.s32.totalorder %s85, %s86
    %p100 = scmp.eq.s32.totalorder %s17, 1
    %p101 = por %p99, %p100
    %p103 = scmp.ne.s32.totalorder %s86, %s102
    %p104 = scmp.eq.s32.totalorder %s17, 0
    %p105 = por %p103, %p104
    %s107 = sadd.s32 %s106, 1
    %p110 = scmp.eq.s32.totalorder %s11, 1
    %p111 = scmp.ne.s32.totalorder %s106, %s108
    %p112 = scmp.eq.s32.totalorder %s11, 0
    %p113 = por %p111, %p112
    %p114 = scmp.ne.s32.totalorder %s106, %s108
    %p115 = scmp.eq.s32.totalorder %s16, 1
    %p116 = por %p114, %p115
    %p117 = scmp.ne.s32.totalorder %s108, %s109
    %p118 = scmp.eq.s32.totalorder %s16, 0
    %p119 = por %p117, %p118
    %p120 = scmp.ne.s32.totalorder %s108, %s109
    %p121 = scmp.eq.s32.totalorder %s17, 1
    %p122 = por %p120, %p121
    %p124 = scmp.ne.s32.totalorder %s109, %s123
    %p125 = scmp.eq.s32.totalorder %s17, 0
    %p126 = por %p124, %p125
    %s128 = sadd.s32 %s127, 1
    %p131 = scmp.eq.s32.totalorder %s11, 1
    %p132 = scmp.ne.s32.totalorder %s127, %s129
    %p133 = scmp.eq.s32.totalorder %s11, 0
    %p134 = por %p132, %p133
    %p135 = scmp.ne.s32.totalorder %s127, %s129
    %p136 = scmp.eq.s32.totalorder %s16, 1
    %p137 = por %p135, %p136
    %p138 = scmp.ne.s32.totalorder %s129, %s130
    %p139 = scmp.eq.s32.totalorder %s16, 0
    %p140 = por %p138, %p139
    %p141 = scmp.ne.s32.totalorder %s129, %s130
    %p142 = scmp.eq.s32.totalorder %s17, 1
    %p143 = por %p141, %p142
    %p145 = scmp.ne.s32.totalorder %s130, %s144
    %p146 = scmp.eq.s32.totalorder %s17, 0
    %p147 = por %p145, %p146
    %s148 = ssub.s32 %s18, %s30
    %p149 = scmp.eq.s32.totalorder %s148, 0
    %s151 = sadd.s32 %s150, 1
    %s152 = scalar_select %p149, %s150, %s151
    %p155 = pneg %p149
    %p156 = scmp.eq.s32.totalorder %s11, 1
    %p157 = por %p155, %p156
    %p158 = scmp.ne.s32.totalorder %s150, %s153
    %p159 = scmp.eq.s32.totalorder %s11, 0
    %p160 = por %p158, %p159
    %p161 = scmp.ne.s32.totalorder %s150, %s153
    %p162 = scmp.eq.s32.totalorder %s16, 1
    %p163 = por %p161, %p162
    %p164 = scmp.ne.s32.totalorder %s153, %s154
    %p165 = scmp.eq.s32.totalorder %s16, 0
    %p166 = por %p164, %p165
    %p167 = scmp.ne.s32.totalorder %s153, %s154
    %p168 = scmp.eq.s32.totalorder %s17, 1
    %p169 = por %p167, %p168
    %p171 = scmp.ne.s32.totalorder %s154, %s170
    %p172 = scmp.eq.s32.totalorder %s17, 0
    %p173 = por %p171, %p172
    %p174 = scmp.le.s32.totalorder 1, %s11
    %p175 = scmp.lt.s32.totalorder %s11, 3
    %p176 = pnand %p174, %p175
    %p177 = pneg %p176
    // Predicated region
    $region9: #{sage_forward.3} parent=5 // pred_check
      _
    $region10: #{sage_forward.3} parent=5 // pred_check_branch
      %179 = sbr.rel (%p176) target = $region12
    $region11: #{sage_forward.3} parent=5 // pred_region
      %s180 = ssub.s32 %s11, 1
      // Predicated region
      $region13: #{sage_forward.3} parent=11 // pred_check
        %p181 = pneg %p72
      $region14: #{sage_forward.3} parent=11 // pred_check_branch
        %183 = sbr.rel (%p181) target = $region16
      $region15: #{sage_forward.3} parent=11 // pred_region
        _
      $region16: #{sage_forward.3} parent=11 // pred_fallthru
        _
      // Predicated region
      $region17: #{sage_forward.3} parent=11 // pred_check
        %p184 = pneg %p119
      $region18: #{sage_forward.3} parent=11 // pred_check_branch
        %186 = sbr.rel (%p184) target = $region20
      $region19: #{sage_forward.3} parent=11 // pred_region
        _
      $region20: #{sage_forward.3} parent=11 // pred_fallthru
        _
      // Predicated region
      $region21: #{sage_forward.3} parent=11 // pred_check
        %p187 = pneg %p140
      $region22: #{sage_forward.3} parent=11 // pred_check_branch
        %189 = sbr.rel (%p187) target = $region24
      $region23: #{sage_forward.3} parent=11 // pred_region
        _
      $region24: #{sage_forward.3} parent=11 // pred_fallthru
        _
    $region12: #{sage_forward.3} parent=5 // pred_fallthru
      _
    %p190 = scmp.lt.s32.totalorder %s11, 2
    // Predicated region
    $region25: #{sage_forward.3} parent=5 // pred_check
      %p191 = pneg %p190
    $region26: #{sage_forward.3} parent=5 // pred_check_branch
      %193 = sbr.rel (%p191) target = $region28
    $region27: #{sage_forward.3} parent=5 // pred_region
      // Predicated region
      $region29: #{sage_forward.3} parent=27 // pred_check
        %p194 = pneg %p45
      $region30: #{sage_forward.3} parent=27 // pred_check_branch
        %196 = sbr.rel (%p194) target = $region32
      $region31: #{sage_forward.3} parent=27 // pred_region
        %s197 = smul.u32 4, %s18
        %s198 = smul.u32 2, %s19
        %p199 = scmp.lt.s32.totalorder %s197, 7
        %s200 = scalar_select %p199, %s197, 7
        %p201 = scmp.lt.s32.totalorder %s198, 1
        %s202 = scalar_select %p201, %s198, 1
        %s203 = smul.addr %s200, 2
        %s204 = sadd.s32 %s202, %s203
        %s205 = smul.addr %s204, 8
        %s206 = scalar_lea.vmem %s0, %s205
        %s207 = smul.u32 4, %s18
        %s208 = smul.u32 2, %s19
      $region32: #{sage_forward.3} parent=27 // pred_fallthru
        _
      // Predicated region
      $region33: #{sage_forward.3} parent=27 // pred_check
        %p209 = pneg %p92
      $region34: #{sage_forward.3} parent=27 // pred_check_branch
        %211 = sbr.rel (%p209) target = $region36
      $region35: #{sage_forward.3} parent=27 // pred_region
        %s212 = smul.u32 16, %s18
        %p213 = scmp.lt.s32.totalorder %s212, 31
        %s214 = scalar_select %p213, %s212, 31
        %s215 = smul.addr %s214, 8
        %s216 = scalar_lea.vmem %s2, %s215
        %s217 = smul.u32 16, %s18
      $region36: #{sage_forward.3} parent=27 // pred_fallthru
        _
    $region28: #{sage_forward.3} parent=5 // pred_fallthru
      _
    %p218 = scmp.le.s32.totalorder 1, %s11
    %p219 = scmp.lt.s32.totalorder %s11, 3
    %p220 = pnand %p218, %p219
    %p221 = pneg %p220
    // Predicated region
    $region37: #{sage_forward.3} parent=5 // pred_check
      _
    $region38: #{sage_forward.3} parent=5 // pred_check_branch
      %223 = sbr.rel (%p220) target = $region40
    $region39: #{sage_forward.3} parent=5 // pred_region
      %s224 = ssub.s32 %s11, 1
      %s225 = smul.u32 4, %s20
      %s226 = smul.u32 2, %s21
      %p227 = scmp.lt.s32.totalorder %s225, 7
      %s228 = scalar_select %p227, %s225, 7
      %p229 = scmp.lt.s32.totalorder %s226, 1
      %s230 = scalar_select %p229, %s226, 1
      %s231 = smul.addr %s228, 2
      %s232 = sadd.s32 %s230, %s231
      %s233 = smul.addr %s232, 8
      %s234 = scalar_lea.vmem %s0, %s233
      %p235 = pneg %p51
      %p236 = pneg %p48
      %p237 = pneg %p72
      %p238 = pneg %p69
      %s239 = smul.u32 16, %s20
      %p240 = scmp.lt.s32.totalorder %s239, 31
      %s241 = scalar_select %p240, %s239, 31
      %s242 = smul.addr %s241, 8
      %s243 = scalar_lea.vmem %s2, %s242
      %p244 = pneg %p98
      %p245 = pneg %p95
      %p246 = pneg %p119
      %p247 = pneg %p116
      %p248 = pneg %p140
      %p249 = pneg %p137
      %p250 = pneg %p166
      %p251 = pneg %p163
      %s252 = smul.u32 16, %s20
      %p253 = scmp.lt.s32.totalorder %s252, 31
      %s254 = scalar_select %p253, %s252, 31
      %s255 = smul.addr %s254, 4
      %s256 = scalar_lea.vmem %s5, %s255
      %s257 = smul.u32 4, %s20
      %s258 = smul.u32 2, %s21
      %p259 = scmp.lt.s32.totalorder %s257, 7
      %s260 = scalar_select %p259, %s257, 7
      %p261 = scmp.lt.s32.totalorder %s258, 1
      %s262 = scalar_select %p261, %s258, 1
      %s263 = smul.addr %s260, 2
      %s264 = sadd.s32 %s262, %s263
      %s265 = smul.addr %s264, 8
      %s266 = scalar_lea.vmem %s0, %s265
      %s267 = smul.u32 4, %s20
      %s268 = smul.u32 2, %s21
      %s269 = smul.u32 16, %s20
      %p270 = scmp.lt.s32.totalorder %s269, 31
      %s271 = scalar_select %p270, %s269, 31
      %s272 = smul.addr %s271, 8
      %s273 = scalar_lea.vmem %s2, %s272
      %s274 = smul.u32 16, %s20
      %s275 = smul.u32 16, %s20
      %p276 = scmp.lt.s32.totalorder %s275, 31
      %s277 = scalar_select %p276, %s275, 31
      %s278 = smul.addr %s277, 4
      %s279 = scalar_lea.vmem %s5, %s278
      %s280 = smul.u32 16, %s20
      %p281 = scmp.eq.s32.totalorder %s21, 0
      // Predicated region
      $region41: #{sage_forward.3} parent=39 // pred_check
        %p282 = pneg %p281
      $region42: #{sage_forward.3} parent=39 // pred_check_branch
        %284 = sbr.rel (%p282) target = $region44
      $region43: #{sage_forward.3} parent=39 // pred_region
        %285 = vst [vmem:[#allocation2] sm:$0xff] 0.0
        %286 = vst [vmem:[#allocation2 + $0x8] sm:$0xff] 0.0
        %287 = vst [vmem:[#allocation2 + $0x10] sm:$0xff] 0.0
        %288 = vst [vmem:[#allocation2 + $0x18] sm:$0xff] 0.0
        %289 = vst [vmem:[#allocation2 + $0x20] sm:$0xff] 0.0
        %290 = vst [vmem:[#allocation2 + $0x28] sm:$0xff] 0.0
        %291 = vst [vmem:[#allocation2 + $0x30] sm:$0xff] 0.0
        %292 = vst [vmem:[#allocation2 + $0x38] sm:$0xff] 0.0
        %293 = vst [vmem:[#allocation2 + $0x40] sm:$0xff] 0.0
        %294 = vst [vmem:[#allocation2 + $0x48] sm:$0xff] 0.0
        %295 = vst [vmem:[#allocation2 + $0x50] sm:$0xff] 0.0
        %296 = vst [vmem:[#allocation2 + $0x58] sm:$0xff] 0.0
        %297 = vst [vmem:[#allocation2 + $0x60] sm:$0xff] 0.0
        %298 = vst [vmem:[#allocation2 + $0x68] sm:$0xff] 0.0
        %299 = vst [vmem:[#allocation2 + $0x70] sm:$0xff] 0.0
        %300 = vst [vmem:[#allocation2 + $0x78] sm:$0xff] 0.0
      $region44: #{sage_forward.3} parent=39 // pred_fallthru
        _
      %s301 = smul.u32 %s21, 256
      %v302 = vld [vmem:[#allocation2] sm:$0xff]
      %v303 = vld [vmem:[#allocation2 + $0x8] sm:$0xff]
      %v304 = vld [vmem:[#allocation2 + $0x10] sm:$0xff]
      %v305 = vld [vmem:[#allocation2 + $0x18] sm:$0xff]
      %v306 = vld [vmem:[#allocation2 + $0x20] sm:$0xff]
      %v307 = vld [vmem:[#allocation2 + $0x28] sm:$0xff]
      %v308 = vld [vmem:[#allocation2 + $0x30] sm:$0xff]
      %v309 = vld [vmem:[#allocation2 + $0x38] sm:$0xff]
      %v310 = vld [vmem:[#allocation2 + $0x40] sm:$0xff]
      %v311 = vld [vmem:[#allocation2 + $0x48] sm:$0xff]
      %v312 = vld [vmem:[#allocation2 + $0x50] sm:$0xff]
      %v313 = vld [vmem:[#allocation2 + $0x58] sm:$0xff]
      %v314 = vld [vmem:[#allocation2 + $0x60] sm:$0xff]
      %v315 = vld [vmem:[#allocation2 + $0x68] sm:$0xff]
      %v316 = vld [vmem:[#allocation2 + $0x70] sm:$0xff]
      %v317 = vld [vmem:[#allocation2 + $0x78] sm:$0xff]
      %v318 = vld [vmem:[%s266] sm:$0xff]
      %v319 = vld [vmem:[%s266 + $0x8] sm:$0xff]
      %v320 = vld [vmem:[%s266 + $0x10] sm:$0xff]
      %v321 = vld [vmem:[%s266 + $0x18] sm:$0xff]
      %v322 = vld [vmem:[%s266 + $0x20] sm:$0xff]
      %v323 = vld [vmem:[%s266 + $0x28] sm:$0xff]
      %v324 = vld [vmem:[%s266 + $0x30] sm:$0xff]
      %v325 = vld [vmem:[%s266 + $0x38] sm:$0xff]
      %v326 = vunpack.c.0.s8 %v318
      %v327 = vunpack.c.0.s8 %v319
      %v328 = vunpack.c.1.s8 %v318
      %v329 = vunpack.c.1.s8 %v319
      %v330 = vunpack.c.2.s8 %v318
      %v331 = vunpack.c.2.s8 %v319
      %v332 = vunpack.c.3.s8 %v318
      %v333 = vunpack.c.3.s8 %v319
      %v334 = vunpack.c.0.s8 %v320
      %v335 = vunpack.c.0.s8 %v321
      %v336 = vunpack.c.1.s8 %v320
      %v337 = vunpack.c.1.s8 %v321
      %v338 = vunpack.c.2.s8 %v320
      %v339 = vunpack.c.2.s8 %v321
      %v340 = vunpack.c.3.s8 %v320
      %v341 = vunpack.c.3.s8 %v321
      %v342 = vunpack.c.0.s8 %v322
      %v343 = vunpack.c.0.s8 %v323
      %v344 = vunpack.c.1.s8 %v322
      %v345 = vunpack.c.1.s8 %v323
      %v346 = vunpack.c.2.s8 %v322
      %v347 = vunpack.c.2.s8 %v323
      %v348 = vunpack.c.3.s8 %v322
      %v349 = vunpack.c.3.s8 %v323
      %v350 = vunpack.c.0.s8 %v324
      %v351 = vunpack.c.0.s8 %v325
      %v352 = vunpack.c.1.s8 %v324
      %v353 = vunpack.c.1.s8 %v325
      %v354 = vunpack.c.2.s8 %v324
      %v355 = vunpack.c.2.s8 %v325
      %v356 = vunpack.c.3.s8 %v324
      %v357 = vunpack.c.3.s8 %v325
      %v358 = vcvt.s32.f32 %v326
      %v359 = vcvt.s32.f32 %v327
      %v360 = vcvt.s32.f32 %v328
      %v361 = vcvt.s32.f32 %v329
      %v362 = vcvt.s32.f32 %v330
      %v363 = vcvt.s32.f32 %v331
      %v364 = vcvt.s32.f32 %v332
      %v365 = vcvt.s32.f32 %v333
      %v366 = vcvt.s32.f32 %v334
      %v367 = vcvt.s32.f32 %v335
      %v368 = vcvt.s32.f32 %v336
      %v369 = vcvt.s32.f32 %v337
      %v370 = vcvt.s32.f32 %v338
      %v371 = vcvt.s32.f32 %v339
      %v372 = vcvt.s32.f32 %v340
      %v373 = vcvt.s32.f32 %v341
      %v374 = vcvt.s32.f32 %v342
      %v375 = vcvt.s32.f32 %v343
      %v376 = vcvt.s32.f32 %v344
      %v377 = vcvt.s32.f32 %v345
      %v378 = vcvt.s32.f32 %v346
      %v379 = vcvt.s32.f32 %v347
      %v380 = vcvt.s32.f32 %v348
      %v381 = vcvt.s32.f32 %v349
      %v382 = vcvt.s32.f32 %v350
      %v383 = vcvt.s32.f32 %v351
      %v384 = vcvt.s32.f32 %v352
      %v385 = vcvt.s32.f32 %v353
      %v386 = vcvt.s32.f32 %v354
      %v387 = vcvt.s32.f32 %v355
      %v388 = vcvt.s32.f32 %v356
      %v389 = vcvt.s32.f32 %v357
      %v390 = vpack.c.bf16 %v360, %v358
      %v391 = vpack.c.bf16 %v361, %v359
      %v392 = vpack.c.bf16 %v364, %v362
      %v393 = vpack.c.bf16 %v365, %v363
      %v394 = vpack.c.bf16 %v368, %v366
      %v395 = vpack.c.bf16 %v369, %v367
      %v396 = vpack.c.bf16 %v372, %v370
      %v397 = vpack.c.bf16 %v373, %v371
      %v398 = vpack.c.bf16 %v376, %v374
      %v399 = vpack.c.bf16 %v377, %v375
      %v400 = vpack.c.bf16 %v380, %v378
      %v401 = vpack.c.bf16 %v381, %v379
      %v402 = vpack.c.bf16 %v384, %v382
      %v403 = vpack.c.bf16 %v385, %v383
      %v404 = vpack.c.bf16 %v388, %v386
      %v405 = vpack.c.bf16 %v389, %v387
      %s406 = sshra.s32 %s301, 3
      %s407 = sand.u32 %s301, 7
      %s408 = smul.addr %s406, 4
      %s409 = scalar_lea.vmem %s1, %s408
      %v410 = vld [vmem:[%s409] sm:$0xf]
      %v411 = vld [vmem:[%s409 + $0x4] sm:$0xf]
      %v412 = vld [vmem:[%s409 + $0x8] sm:$0xf]
      %v413 = vld [vmem:[%s409 + $0xc] sm:$0xf]
      %v414 = vld [vmem:[%s409 + $0x10] sm:$0xf]
      %v415 = vld [vmem:[%s409 + $0x14] sm:$0xf]
      %v416 = vld [vmem:[%s409 + $0x18] sm:$0xf]
      %v417 = vld [vmem:[%s409 + $0x1c] sm:$0xf]
      %v418 = vld [vmem:[%s409 + $0x20] sm:$0xf]
      %v419 = vld [vmem:[%s409 + $0x24] sm:$0xf]
      %v420 = vld [vmem:[%s409 + $0x28] sm:$0xf]
      %v421 = vld [vmem:[%s409 + $0x2c] sm:$0xf]
      %v422 = vld [vmem:[%s409 + $0x30] sm:$0xf]
      %v423 = vld [vmem:[%s409 + $0x34] sm:$0xf]
      %v424 = vld [vmem:[%s409 + $0x38] sm:$0xf]
      %v425 = vld [vmem:[%s409 + $0x3c] sm:$0xf]
      %v426 = vld [vmem:[%s409 + $0x40] sm:$0xf]
      %v427 = vld [vmem:[%s409 + $0x44] sm:$0xf]
      %v428 = vld [vmem:[%s409 + $0x48] sm:$0xf]
      %v429 = vld [vmem:[%s409 + $0x4c] sm:$0xf]
      %v430 = vld [vmem:[%s409 + $0x50] sm:$0xf]
      %v431 = vld [vmem:[%s409 + $0x54] sm:$0xf]
      %v432 = vld [vmem:[%s409 + $0x58] sm:$0xf]
      %v433 = vld [vmem:[%s409 + $0x5c] sm:$0xf]
      %v434 = vld [vmem:[%s409 + $0x60] sm:$0xf]
      %v435 = vld [vmem:[%s409 + $0x64] sm:$0xf]
      %v436 = vld [vmem:[%s409 + $0x68] sm:$0xf]
      %v437 = vld [vmem:[%s409 + $0x6c] sm:$0xf]
      %v438 = vld [vmem:[%s409 + $0x70] sm:$0xf]
      %v439 = vld [vmem:[%s409 + $0x74] sm:$0xf]
      %v440 = vld [vmem:[%s409 + $0x78] sm:$0xf]
      %v441 = vld [vmem:[%s409 + $0x7c] sm:$0xf]
      %v474 = vunpack.c.l.b16 %v410
      %v475 = vunpack.c.l.b16 %v411
      %v476 = vunpack.c.l.b16 %v412
      %v477 = vunpack.c.l.b16 %v413
      %v478 = vunpack.c.l.b16 %v414
      %v479 = vunpack.c.l.b16 %v415
      %v480 = vunpack.c.l.b16 %v416
      %v481 = vunpack.c.l.b16 %v417
      %v482 = vunpack.c.l.b16 %v418
      %v483 = vunpack.c.l.b16 %v419
      %v484 = vunpack.c.l.b16 %v420
      %v485 = vunpack.c.l.b16 %v421
      %v486 = vunpack.c.l.b16 %v422
      %v487 = vunpack.c.l.b16 %v423
      %v488 = vunpack.c.l.b16 %v424
      %v489 = vunpack.c.l.b16 %v425
      %v490 = vunpack.c.l.b16 %v426
      %v491 = vunpack.c.l.b16 %v427
      %v492 = vunpack.c.l.b16 %v428
      %v493 = vunpack.c.l.b16 %v429
      %v494 = vunpack.c.l.b16 %v430
      %v495 = vunpack.c.l.b16 %v431
      %v496 = vunpack.c.l.b16 %v432
      %v497 = vunpack.c.l.b16 %v433
      %v498 = vunpack.c.l.b16 %v434
      %v499 = vunpack.c.l.b16 %v435
      %v500 = vunpack.c.l.b16 %v436
      %v501 = vunpack.c.l.b16 %v437
      %v502 = vunpack.c.l.b16 %v438
      %v503 = vunpack.c.l.b16 %v439
      %v504 = vunpack.c.l.b16 %v440
      %v505 = vunpack.c.l.b16 %v441
      %v506 = vpack.c.b16 %v475, %v474
      %v507 = vpack.c.b16 %v477, %v476
      %v508 = vpack.c.b16 %v479, %v478
      %v509 = vpack.c.b16 %v481, %v480
      %v510 = vpack.c.b16 %v483, %v482
      %v511 = vpack.c.b16 %v485, %v484
      %v512 = vpack.c.b16 %v487, %v486
      %v513 = vpack.c.b16 %v489, %v488
      %v514 = vpack.c.b16 %v491, %v490
      %v515 = vpack.c.b16 %v493, %v492
      %v516 = vpack.c.b16 %v495, %v494
      %v517 = vpack.c.b16 %v497, %v496
      %v518 = vpack.c.b16 %v499, %v498
      %v519 = vpack.c.b16 %v501, %v500
      %v520 = vpack.c.b16 %v503, %v502
      %v521 = vpack.c.b16 %v505, %v504
      %538 = vmatpush.bf16.msra.mxu0 %v513
      %539 = vmatpush.bf16.msra.mxu0 %v512
      %540 = vmatpush.bf16.msra.mxu0 %v511
      %541 = vmatpush.bf16.msra.mxu0 %v510
      %542 = vmatpush.bf16.msra.mxu0 %v509
      %543 = vmatpush.bf16.msra.mxu0 %v508
      %544 = vmatpush.bf16.msra.mxu0 %v507
      %545 = vmatpush.bf16.msra.mxu0 %v506
      %546 = vmatmul.bf16.gmra.mxu0 %v390
      %v547 = vpop.f32.mrf.mxu0
      %v548 = vadd.f32 0.0, %v547
      %v549 = vpop.f32.mrf.mxu0
      %v550 = vadd.f32 0.0, %v549
      %551 = vmatmul.bf16.gmra.mxu0 %v392
      %v552 = vpop.f32.mrf.mxu0
      %v553 = vadd.f32 0.0, %v552
      %v554 = vpop.f32.mrf.mxu0
      %v555 = vadd.f32 0.0, %v554
      %556 = vmatmul.bf16.gmra.mxu0 %v394
      %v557 = vpop.f32.mrf.mxu0
      %v558 = vadd.f32 0.0, %v557
      %v559 = vpop.f32.mrf.mxu0
      %v560 = vadd.f32 0.0, %v559
      %561 = vmatmul.bf16.gmra.mxu0 %v396
      %v562 = vpop.f32.mrf.mxu0
      %v563 = vadd.f32 0.0, %v562
      %v564 = vpop.f32.mrf.mxu0
      %v565 = vadd.f32 0.0, %v564
      %566 = vmatmul.bf16.gmra.mxu0 %v398
      %v567 = vpop.f32.mrf.mxu0
      %v568 = vadd.f32 0.0, %v567
      %v569 = vpop.f32.mrf.mxu0
      %v570 = vadd.f32 0.0, %v569
      %571 = vmatmul.bf16.gmra.mxu0 %v400
      %v572 = vpop.f32.mrf.mxu0
      %v573 = vadd.f32 0.0, %v572
      %v574 = vpop.f32.mrf.mxu0
      %v575 = vadd.f32 0.0, %v574
      %576 = vmatmul.bf16.gmra.mxu0 %v402
      %v577 = vpop.f32.mrf.mxu0
      %v578 = vadd.f32 0.0, %v577
      %v579 = vpop.f32.mrf.mxu0
      %v580 = vadd.f32 0.0, %v579
      %581 = vmatmul.bf16.gmra.mxu0 %v404
      %v582 = vpop.f32.mrf.mxu0
      %v583 = vadd.f32 0.0, %v582
      %v584 = vpop.f32.mrf.mxu0
      %v585 = vadd.f32 0.0, %v584
      %586 = vdwg.mxu0
      %587 = vmatpush.bf16.msra.mxu0 %v521
      %588 = vmatpush.bf16.msra.mxu0 %v520
      %589 = vmatpush.bf16.msra.mxu0 %v519
      %590 = vmatpush.bf16.msra.mxu0 %v518
      %591 = vmatpush.bf16.msra.mxu0 %v517
      %592 = vmatpush.bf16.msra.mxu0 %v516
      %593 = vmatpush.bf16.msra.mxu0 %v515
      %594 = vmatpush.bf16.msra.mxu0 %v514
      %595 = vmatmul.bf16.gmra.mxu0 %v391
      %v596 = vpop.f32.mrf.mxu0
      %v597 = vadd.f32 %v548, %v596
      %v598 = vpop.f32.mrf.mxu0
      %v599 = vadd.f32 %v550, %v598
      %600 = vmatmul.bf16.gmra.mxu0 %v393
      %v601 = vpop.f32.mrf.mxu0
      %v602 = vadd.f32 %v553, %v601
      %v603 = vpop.f32.mrf.mxu0
      %v604 = vadd.f32 %v555, %v603
      %605 = vmatmul.bf16.gmra.mxu0 %v395
      %v606 = vpop.f32.mrf.mxu0
      %v607 = vadd.f32 %v558, %v606
      %v608 = vpop.f32.mrf.mxu0
      %v609 = vadd.f32 %v560, %v608
      %610 = vmatmul.bf16.gmra.mxu0 %v397
      %v611 = vpop.f32.mrf.mxu0
      %v612 = vadd.f32 %v563, %v611
      %v613 = vpop.f32.mrf.mxu0
      %v614 = vadd.f32 %v565, %v613
      %615 = vmatmul.bf16.gmra.mxu0 %v399
      %v616 = vpop.f32.mrf.mxu0
      %v617 = vadd.f32 %v568, %v616
      %v618 = vpop.f32.mrf.mxu0
      %v619 = vadd.f32 %v570, %v618
      %620 = vmatmul.bf16.gmra.mxu0 %v401
      %v621 = vpop.f32.mrf.mxu0
      %v622 = vadd.f32 %v573, %v621
      %v623 = vpop.f32.mrf.mxu0
      %v624 = vadd.f32 %v575, %v623
      %625 = vmatmul.bf16.gmra.mxu0 %v403
      %v626 = vpop.f32.mrf.mxu0
      %v627 = vadd.f32 %v578, %v626
      %v628 = vpop.f32.mrf.mxu0
      %v629 = vadd.f32 %v580, %v628
      %630 = vmatmul.bf16.gmra.mxu0 %v405
      %v631 = vpop.f32.mrf.mxu0
      %v632 = vadd.f32 %v583, %v631
      %v633 = vpop.f32.mrf.mxu0
      %v634 = vadd.f32 %v585, %v633
      %635 = vdwg.mxu0
      %v636 = vadd.f32 %v302, %v597
      %v637 = vadd.f32 %v303, %v599
      %v638 = vadd.f32 %v304, %v602
      %v639 = vadd.f32 %v305, %v604
      %v640 = vadd.f32 %v306, %v607
      %v641 = vadd.f32 %v307, %v609
      %v642 = vadd.f32 %v308, %v612
      %v643 = vadd.f32 %v309, %v614
      %v644 = vadd.f32 %v310, %v617
      %v645 = vadd.f32 %v311, %v619
      %v646 = vadd.f32 %v312, %v622
      %v647 = vadd.f32 %v313, %v624
      %v648 = vadd.f32 %v314, %v627
      %v649 = vadd.f32 %v315, %v629
      %v650 = vadd.f32 %v316, %v632
      %v651 = vadd.f32 %v317, %v634
      %652 = vst [vmem:[#allocation2] sm:$0xff] %v636
      %653 = vst [vmem:[#allocation2 + $0x8] sm:$0xff] %v637
      %654 = vst [vmem:[#allocation2 + $0x10] sm:$0xff] %v638
      %655 = vst [vmem:[#allocation2 + $0x18] sm:$0xff] %v639
      %656 = vst [vmem:[#allocation2 + $0x20] sm:$0xff] %v640
      %657 = vst [vmem:[#allocation2 + $0x28] sm:$0xff] %v641
      %658 = vst [vmem:[#allocation2 + $0x30] sm:$0xff] %v642
      %659 = vst [vmem:[#allocation2 + $0x38] sm:$0xff] %v643
      %660 = vst [vmem:[#allocation2 + $0x40] sm:$0xff] %v644
      %661 = vst [vmem:[#allocation2 + $0x48] sm:$0xff] %v645
      %662 = vst [vmem:[#allocation2 + $0x50] sm:$0xff] %v646
      %663 = vst [vmem:[#allocation2 + $0x58] sm:$0xff] %v647
      %664 = vst [vmem:[#allocation2 + $0x60] sm:$0xff] %v648
      %665 = vst [vmem:[#allocation2 + $0x68] sm:$0xff] %v649
      %666 = vst [vmem:[#allocation2 + $0x70] sm:$0xff] %v650
      %667 = vst [vmem:[#allocation2 + $0x78] sm:$0xff] %v651
      // Predicated region
      $region45: #{sage_forward.3} parent=39 // pred_check
        %p668 = pneg %p281
      $region46: #{sage_forward.3} parent=39 // pred_check_branch
        %670 = sbr.rel (%p668) target = $region48
      $region47: #{sage_forward.3} parent=39 // pred_region
        %v671 = vld [vmem:[#allocation2] sm:$0xff]
        %v672 = vld [vmem:[#allocation2 + $0x8] sm:$0xff]
        %v673 = vld [vmem:[#allocation2 + $0x10] sm:$0xff]
        %v674 = vld [vmem:[#allocation2 + $0x18] sm:$0xff]
        %v675 = vld [vmem:[#allocation2 + $0x20] sm:$0xff]
        %v676 = vld [vmem:[#allocation2 + $0x28] sm:$0xff]
        %v677 = vld [vmem:[#allocation2 + $0x30] sm:$0xff]
        %v678 = vld [vmem:[#allocation2 + $0x38] sm:$0xff]
        %v679 = vld [vmem:[#allocation2 + $0x40] sm:$0xff]
        %v680 = vld [vmem:[#allocation2 + $0x48] sm:$0xff]
        %v681 = vld [vmem:[#allocation2 + $0x50] sm:$0xff]
        %v682 = vld [vmem:[#allocation2 + $0x58] sm:$0xff]
        %v683 = vld [vmem:[#allocation2 + $0x60] sm:$0xff]
        %v684 = vld [vmem:[#allocation2 + $0x68] sm:$0xff]
        %v685 = vld [vmem:[#allocation2 + $0x70] sm:$0xff]
        %v686 = vld [vmem:[#allocation2 + $0x78] sm:$0xff]
        %v687 = vld [vmem:[%s273] sm:$0xff]
        %v688 = vld [vmem:[%s273 + $0x8] sm:$0xff]
        %v689 = vld [vmem:[%s273 + $0x10] sm:$0xff]
        %v690 = vld [vmem:[%s273 + $0x18] sm:$0xff]
        %v691 = vld [vmem:[%s273 + $0x20] sm:$0xff]
        %v692 = vld [vmem:[%s273 + $0x28] sm:$0xff]
        %v693 = vld [vmem:[%s273 + $0x30] sm:$0xff]
        %v694 = vld [vmem:[%s273 + $0x38] sm:$0xff]
        %v695 = vld [vmem:[%s273 + $0x40] sm:$0xff]
        %v696 = vld [vmem:[%s273 + $0x48] sm:$0xff]
        %v697 = vld [vmem:[%s273 + $0x50] sm:$0xff]
        %v698 = vld [vmem:[%s273 + $0x58] sm:$0xff]
        %v699 = vld [vmem:[%s273 + $0x60] sm:$0xff]
        %v700 = vld [vmem:[%s273 + $0x68] sm:$0xff]
        %v701 = vld [vmem:[%s273 + $0x70] sm:$0xff]
        %v702 = vld [vmem:[%s273 + $0x78] sm:$0xff]
        %704 = vset.pattern.permute.xlu0 0
        %705 = vperm.xlu0 %704, %v687
        %v706 = vpop.permute.xlu0 %705
        %709 = vset.pattern.permute.xlu0 0
        %710 = vperm.xlu0 %709, %v688
        %v711 = vpop.permute.xlu0 %710
        %714 = vset.pattern.permute.xlu0 0
        %715 = vperm.xlu0 %714, %v689
        %v716 = vpop.permute.xlu0 %715
        %719 = vset.pattern.permute.xlu0 0
        %720 = vperm.xlu0 %719, %v690
        %v721 = vpop.permute.xlu0 %720
        %724 = vset.pattern.permute.xlu0 0
        %725 = vperm.xlu0 %724, %v691
        %v726 = vpop.permute.xlu0 %725
        %729 = vset.pattern.permute.xlu0 0
        %730 = vperm.xlu0 %729, %v692
        %v731 = vpop.permute.xlu0 %730
        %734 = vset.pattern.permute.xlu0 0
        %735 = vperm.xlu0 %734, %v693
        %v736 = vpop.permute.xlu0 %735
        %739 = vset.pattern.permute.xlu0 0
        %740 = vperm.xlu0 %739, %v694
        %v741 = vpop.permute.xlu0 %740
        %744 = vset.pattern.permute.xlu0 0
        %745 = vperm.xlu0 %744, %v695
        %v746 = vpop.permute.xlu0 %745
        %749 = vset.pattern.permute.xlu0 0
        %750 = vperm.xlu0 %749, %v696
        %v751 = vpop.permute.xlu0 %750
        %754 = vset.pattern.permute.xlu0 0
        %755 = vperm.xlu0 %754, %v697
        %v756 = vpop.permute.xlu0 %755
        %759 = vset.pattern.permute.xlu0 0
        %760 = vperm.xlu0 %759, %v698
        %v761 = vpop.permute.xlu0 %760
        %764 = vset.pattern.permute.xlu0 0
        %765 = vperm.xlu0 %764, %v699
        %v766 = vpop.permute.xlu0 %765
        %769 = vset.pattern.permute.xlu0 0
        %770 = vperm.xlu0 %769, %v700
        %v771 = vpop.permute.xlu0 %770
        %774 = vset.pattern.permute.xlu0 0
        %775 = vperm.xlu0 %774, %v701
        %v776 = vpop.permute.xlu0 %775
        %779 = vset.pattern.permute.xlu0 0
        %780 = vperm.xlu0 %779, %v702
        %v781 = vpop.permute.xlu0 %780
        %v783 = vmul.f32 %v671, %v706
        %v784 = vmul.f32 %v672, %v711
        %v785 = vmul.f32 %v673, %v716
        %v786 = vmul.f32 %v674, %v721
        %v787 = vmul.f32 %v675, %v726
        %v788 = vmul.f32 %v676, %v731
        %v789 = vmul.f32 %v677, %v736
        %v790 = vmul.f32 %v678, %v741
        %v791 = vmul.f32 %v679, %v746
        %v792 = vmul.f32 %v680, %v751
        %v793 = vmul.f32 %v681, %v756
        %v794 = vmul.f32 %v682, %v761
        %v795 = vmul.f32 %v683, %v766
        %v796 = vmul.f32 %v684, %v771
        %v797 = vmul.f32 %v685, %v776
        %v798 = vmul.f32 %v686, %v781
        %s799 = smul.u32 %s20, 128
        %s800 = sshra.s32 %s799, 3
        %s801 = sand.u32 %s799, 7
        %s802 = smul.addr %s800, 4
        %s803 = scalar_lea.vmem %s1, %s802
        %v804 = vld [vmem:[%s803] sm:$0xf]
        %v805 = vld [vmem:[%s803 + $0x4] sm:$0xf]
        %v806 = vld [vmem:[%s803 + $0x8] sm:$0xf]
        %v807 = vld [vmem:[%s803 + $0xc] sm:$0xf]
        %v808 = vld [vmem:[%s803 + $0x10] sm:$0xf]
        %v809 = vld [vmem:[%s803 + $0x14] sm:$0xf]
        %v810 = vld [vmem:[%s803 + $0x18] sm:$0xf]
        %v811 = vld [vmem:[%s803 + $0x1c] sm:$0xf]
        %v812 = vld [vmem:[%s803 + $0x20] sm:$0xf]
        %v813 = vld [vmem:[%s803 + $0x24] sm:$0xf]
        %v814 = vld [vmem:[%s803 + $0x28] sm:$0xf]
        %v815 = vld [vmem:[%s803 + $0x2c] sm:$0xf]
        %v816 = vld [vmem:[%s803 + $0x30] sm:$0xf]
        %v817 = vld [vmem:[%s803 + $0x34] sm:$0xf]
        %v818 = vld [vmem:[%s803 + $0x38] sm:$0xf]
        %v819 = vld [vmem:[%s803 + $0x3c] sm:$0xf]
        %v820 = vpack.c.bf16 %v784, %v783
        %v821 = vpack.c.bf16 %v786, %v785
        %v822 = vpack.c.bf16 %v788, %v787
        %v823 = vpack.c.bf16 %v790, %v789
        %v824 = vpack.c.bf16 %v792, %v791
        %v825 = vpack.c.bf16 %v794, %v793
        %v826 = vpack.c.bf16 %v796, %v795
        %v827 = vpack.c.bf16 %v798, %v797
        %v828 = vld [vmem:[%s3] sm:$0xf]
        %v829 = vld [vmem:[%s3 + $0x4] sm:$0xf]
        %v830 = vld [vmem:[%s3 + $0x8] sm:$0xf]
        %v831 = vld [vmem:[%s3 + $0xc] sm:$0xf]
        %v832 = vld [vmem:[%s3 + $0x10] sm:$0xf]
        %v833 = vld [vmem:[%s3 + $0x14] sm:$0xf]
        %v834 = vld [vmem:[%s3 + $0x18] sm:$0xf]
        %v835 = vld [vmem:[%s3 + $0x1c] sm:$0xf]
        %v836 = vld [vmem:[%s3 + $0x20] sm:$0xf]
        %v837 = vld [vmem:[%s3 + $0x24] sm:$0xf]
        %v838 = vld [vmem:[%s3 + $0x28] sm:$0xf]
        %v839 = vld [vmem:[%s3 + $0x2c] sm:$0xf]
        %v840 = vld [vmem:[%s3 + $0x30] sm:$0xf]
        %v841 = vld [vmem:[%s3 + $0x34] sm:$0xf]
        %v842 = vld [vmem:[%s3 + $0x38] sm:$0xf]
        %v843 = vld [vmem:[%s3 + $0x3c] sm:$0xf]
        %v844 = vld [vmem:[%s3 + $0x40] sm:$0xf]
        %v845 = vld [vmem:[%s3 + $0x44] sm:$0xf]
        %v846 = vld [vmem:[%s3 + $0x48] sm:$0xf]
        %v847 = vld [vmem:[%s3 + $0x4c] sm:$0xf]
        %v848 = vld [vmem:[%s3 + $0x50] sm:$0xf]
        %v849 = vld [vmem:[%s3 + $0x54] sm:$0xf]
        %v850 = vld [vmem:[%s3 + $0x58] sm:$0xf]
        %v851 = vld [vmem:[%s3 + $0x5c] sm:$0xf]
        %v852 = vld [vmem:[%s3 + $0x60] sm:$0xf]
        %v853 = vld [vmem:[%s3 + $0x64] sm:$0xf]
        %v854 = vld [vmem:[%s3 + $0x68] sm:$0xf]
        %v855 = vld [vmem:[%s3 + $0x6c] sm:$0xf]
        %v856 = vld [vmem:[%s3 + $0x70] sm:$0xf]
        %v857 = vld [vmem:[%s3 + $0x74] sm:$0xf]
        %v858 = vld [vmem:[%s3 + $0x78] sm:$0xf]
        %v859 = vld [vmem:[%s3 + $0x7c] sm:$0xf]
        %v876 = vunpack.c.l.b16 %v804
        %v877 = vunpack.c.l.b16 %v805
        %v878 = vunpack.c.l.b16 %v806
        %v879 = vunpack.c.l.b16 %v807
        %v880 = vunpack.c.l.b16 %v808
        %v881 = vunpack.c.l.b16 %v809
        %v882 = vunpack.c.l.b16 %v810
        %v883 = vunpack.c.l.b16 %v811
        %v884 = vunpack.c.l.b16 %v812
        %v885 = vunpack.c.l.b16 %v813
        %v886 = vunpack.c.l.b16 %v814
        %v887 = vunpack.c.l.b16 %v815
        %v888 = vunpack.c.l.b16 %v816
        %v889 = vunpack.c.l.b16 %v817
        %v890 = vunpack.c.l.b16 %v818
        %v891 = vunpack.c.l.b16 %v819
        %v892 = vpack.c.b16 %v877, %v876
        %v893 = vpack.c.b16 %v879, %v878
        %v894 = vpack.c.b16 %v881, %v880
        %v895 = vpack.c.b16 %v883, %v882
        %v896 = vpack.c.b16 %v885, %v884
        %v897 = vpack.c.b16 %v887, %v886
        %v898 = vpack.c.b16 %v889, %v888
        %v899 = vpack.c.b16 %v891, %v890
        %v924 = vunpack.c.l.b16 %v844
        %v925 = vunpack.c.l.b16 %v845
        %v926 = vunpack.c.l.b16 %v846
        %v927 = vunpack.c.l.b16 %v847
        %v928 = vunpack.c.l.b16 %v848
        %v929 = vunpack.c.l.b16 %v849
        %v930 = vunpack.c.l.b16 %v850
        %v931 = vunpack.c.l.b16 %v851
        %v932 = vunpack.c.l.b16 %v852
        %v933 = vunpack.c.l.b16 %v853
        %v934 = vunpack.c.l.b16 %v854
        %v935 = vunpack.c.l.b16 %v855
        %v936 = vunpack.c.l.b16 %v856
        %v937 = vunpack.c.l.b16 %v857
        %v938 = vunpack.c.l.b16 %v858
        %v939 = vunpack.c.l.b16 %v859
        %v940 = vpack.c.b16 %v925, %v924
        %v941 = vpack.c.b16 %v927, %v926
        %v942 = vpack.c.b16 %v929, %v928
        %v943 = vpack.c.b16 %v931, %v930
        %v944 = vpack.c.b16 %v933, %v932
        %v945 = vpack.c.b16 %v935, %v934
        %v946 = vpack.c.b16 %v937, %v936
        %v947 = vpack.c.b16 %v939, %v938
        %956 = vmatpush.bf16.msra.mxu0 %v947
        %957 = vmatpush.bf16.msra.mxu0 %v946
        %958 = vmatpush.bf16.msra.mxu0 %v945
        %959 = vmatpush.bf16.msra.mxu0 %v944
        %960 = vmatpush.bf16.msra.mxu0 %v943
        %961 = vmatpush.bf16.msra.mxu0 %v942
        %962 = vmatpush.bf16.msra.mxu0 %v941
        %963 = vmatpush.bf16.msra.mxu0 %v940
        %964 = vmatmul.bf16.gmra.mxu0 %v892
        %v965 = vpop.f32.mrf.mxu0
        %v966 = vadd.f32 0.0, %v965
        %v967 = vpop.f32.mrf.mxu0
        %v968 = vadd.f32 0.0, %v967
        %969 = vmatmul.bf16.gmra.mxu0 %v893
        %v970 = vpop.f32.mrf.mxu0
        %v971 = vadd.f32 0.0, %v970
        %v972 = vpop.f32.mrf.mxu0
        %v973 = vadd.f32 0.0, %v972
        %974 = vmatmul.bf16.gmra.mxu0 %v894
        %v975 = vpop.f32.mrf.mxu0
        %v976 = vadd.f32 0.0, %v975
        %v977 = vpop.f32.mrf.mxu0
        %v978 = vadd.f32 0.0, %v977
        %979 = vmatmul.bf16.gmra.mxu0 %v895
        %v980 = vpop.f32.mrf.mxu0
        %v981 = vadd.f32 0.0, %v980
        %v982 = vpop.f32.mrf.mxu0
        %v983 = vadd.f32 0.0, %v982
        %984 = vmatmul.bf16.gmra.mxu0 %v896
        %v985 = vpop.f32.mrf.mxu0
        %v986 = vadd.f32 0.0, %v985
        %v987 = vpop.f32.mrf.mxu0
        %v988 = vadd.f32 0.0, %v987
        %989 = vmatmul.bf16.gmra.mxu0 %v897
        %v990 = vpop.f32.mrf.mxu0
        %v991 = vadd.f32 0.0, %v990
        %v992 = vpop.f32.mrf.mxu0
        %v993 = vadd.f32 0.0, %v992
        %994 = vmatmul.bf16.gmra.mxu0 %v898
        %v995 = vpop.f32.mrf.mxu0
        %v996 = vadd.f32 0.0, %v995
        %v997 = vpop.f32.mrf.mxu0
        %v998 = vadd.f32 0.0, %v997
        %999 = vmatmul.bf16.gmra.mxu0 %v899
        %v1000 = vpop.f32.mrf.mxu0
        %v1001 = vadd.f32 0.0, %v1000
        %v1002 = vpop.f32.mrf.mxu0
        %v1003 = vadd.f32 0.0, %v1002
        %1004 = vdwg.mxu0
        %v1021 = vunpack.c.l.b16 %v828
        %v1022 = vunpack.c.l.b16 %v829
        %v1023 = vunpack.c.l.b16 %v830
        %v1024 = vunpack.c.l.b16 %v831
        %v1025 = vunpack.c.l.b16 %v832
        %v1026 = vunpack.c.l.b16 %v833
        %v1027 = vunpack.c.l.b16 %v834
        %v1028 = vunpack.c.l.b16 %v835
        %v1029 = vunpack.c.l.b16 %v836
        %v1030 = vunpack.c.l.b16 %v837
        %v1031 = vunpack.c.l.b16 %v838
        %v1032 = vunpack.c.l.b16 %v839
        %v1033 = vunpack.c.l.b16 %v840
        %v1034 = vunpack.c.l.b16 %v841
        %v1035 = vunpack.c.l.b16 %v842
        %v1036 = vunpack.c.l.b16 %v843
        %v1037 = vpack.c.b16 %v1022, %v1021
        %v1038 = vpack.c.b16 %v1024, %v1023
        %v1039 = vpack.c.b16 %v1026, %v1025
        %v1040 = vpack.c.b16 %v1028, %v1027
        %v1041 = vpack.c.b16 %v1030, %v1029
        %v1042 = vpack.c.b16 %v1032, %v1031
        %v1043 = vpack.c.b16 %v1034, %v1033
        %v1044 = vpack.c.b16 %v1036, %v1035
        %1053 = vmatpush.bf16.msra.mxu0 %v1044
        %1054 = vmatpush.bf16.msra.mxu0 %v1043
        %1055 = vmatpush.bf16.msra.mxu0 %v1042
        %1056 = vmatpush.bf16.msra.mxu0 %v1041
        %1057 = vmatpush.bf16.msra.mxu0 %v1040
        %1058 = vmatpush.bf16.msra.mxu0 %v1039
        %1059 = vmatpush.bf16.msra.mxu0 %v1038
        %1060 = vmatpush.bf16.msra.mxu0 %v1037
        %1061 = vmatmul.bf16.gmra.mxu0 %v820
        %v1062 = vpop.f32.mrf.mxu0
        %v1063 = vadd.f32 %v966, %v1062
        %v1064 = vpop.f32.mrf.mxu0
        %v1065 = vadd.f32 %v968, %v1064
        %1066 = vmatmul.bf16.gmra.mxu0 %v821
        %v1067 = vpop.f32.mrf.mxu0
        %v1068 = vadd.f32 %v971, %v1067
        %v1069 = vpop.f32.mrf.mxu0
        %v1070 = vadd.f32 %v973, %v1069
        %1071 = vmatmul.bf16.gmra.mxu0 %v822
        %v1072 = vpop.f32.mrf.mxu0
        %v1073 = vadd.f32 %v976, %v1072
        %v1074 = vpop.f32.mrf.mxu0
        %v1075 = vadd.f32 %v978, %v1074
        %1076 = vmatmul.bf16.gmra.mxu0 %v823
        %v1077 = vpop.f32.mrf.mxu0
        %v1078 = vadd.f32 %v981, %v1077
        %v1079 = vpop.f32.mrf.mxu0
        %v1080 = vadd.f32 %v983, %v1079
        %1081 = vmatmul.bf16.gmra.mxu0 %v824
        %v1082 = vpop.f32.mrf.mxu0
        %v1083 = vadd.f32 %v986, %v1082
        %v1084 = vpop.f32.mrf.mxu0
        %v1085 = vadd.f32 %v988, %v1084
        %1086 = vmatmul.bf16.gmra.mxu0 %v825
        %v1087 = vpop.f32.mrf.mxu0
        %v1088 = vadd.f32 %v991, %v1087
        %v1089 = vpop.f32.mrf.mxu0
        %v1090 = vadd.f32 %v993, %v1089
        %1091 = vmatmul.bf16.gmra.mxu0 %v826
        %v1092 = vpop.f32.mrf.mxu0
        %v1093 = vadd.f32 %v996, %v1092
        %v1094 = vpop.f32.mrf.mxu0
        %v1095 = vadd.f32 %v998, %v1094
        %1096 = vmatmul.bf16.gmra.mxu0 %v827
        %v1097 = vpop.f32.mrf.mxu0
        %v1098 = vadd.f32 %v1001, %v1097
        %v1099 = vpop.f32.mrf.mxu0
        %v1100 = vadd.f32 %v1003, %v1099
        %1101 = vdwg.mxu0
        %v1102 = vld [vmem:[%s4] sm:$0x1]
        %v1104 = vperm.slane %v1102, 0
        %v1106 = vadd.f32 %v1063, %v1104
        %v1107 = vadd.f32 %v1065, %v1104
        %v1108 = vadd.f32 %v1068, %v1104
        %v1109 = vadd.f32 %v1070, %v1104
        %v1110 = vadd.f32 %v1073, %v1104
        %v1111 = vadd.f32 %v1075, %v1104
        %v1112 = vadd.f32 %v1078, %v1104
        %v1113 = vadd.f32 %v1080, %v1104
        %v1114 = vadd.f32 %v1083, %v1104
        %v1115 = vadd.f32 %v1085, %v1104
        %v1116 = vadd.f32 %v1088, %v1104
        %v1117 = vadd.f32 %v1090, %v1104
        %v1118 = vadd.f32 %v1093, %v1104
        %v1119 = vadd.f32 %v1095, %v1104
        %v1120 = vadd.f32 %v1098, %v1104
        %v1121 = vadd.f32 %v1100, %v1104
        %v1122 = vmax.f32 %v1106, 0.0
        %v1123 = vmax.f32 %v1107, 0.0
        %v1124 = vmax.f32 %v1108, 0.0
        %v1125 = vmax.f32 %v1109, 0.0
        %v1126 = vmax.f32 %v1110, 0.0
        %v1127 = vmax.f32 %v1111, 0.0
        %v1128 = vmax.f32 %v1112, 0.0
        %v1129 = vmax.f32 %v1113, 0.0
        %v1130 = vmax.f32 %v1114, 0.0
        %v1131 = vmax.f32 %v1115, 0.0
        %v1132 = vmax.f32 %v1116, 0.0
        %v1133 = vmax.f32 %v1117, 0.0
        %v1134 = vmax.f32 %v1118, 0.0
        %v1135 = vmax.f32 %v1119, 0.0
        %v1136 = vmax.f32 %v1120, 0.0
        %v1137 = vmax.f32 %v1121, 0.0
        %v1138 = vpack.c.bf16 %v1122, %v1122
        %v1139 = vpack.c.bf16 %v1123, %v1123
        %v1140 = vpack.c.bf16 %v1124, %v1124
        %v1141 = vpack.c.bf16 %v1125, %v1125
        %v1142 = vpack.c.bf16 %v1126, %v1126
        %v1143 = vpack.c.bf16 %v1127, %v1127
        %v1144 = vpack.c.bf16 %v1128, %v1128
        %v1145 = vpack.c.bf16 %v1129, %v1129
        %v1146 = vpack.c.bf16 %v1130, %v1130
        %v1147 = vpack.c.bf16 %v1131, %v1131
        %v1148 = vpack.c.bf16 %v1132, %v1132
        %v1149 = vpack.c.bf16 %v1133, %v1133
        %v1150 = vpack.c.bf16 %v1134, %v1134
        %v1151 = vpack.c.bf16 %v1135, %v1135
        %v1152 = vpack.c.bf16 %v1136, %v1136
        %v1153 = vpack.c.bf16 %v1137, %v1137
        %1154 = vst [vmem:[%s279] sm:$0xf] %v1138
        %1155 = vst [vmem:[%s279 + $0x4] sm:$0xf] %v1139
        %1156 = vst [vmem:[%s279 + $0x8] sm:$0xf] %v1140
        %1157 = vst [vmem:[%s279 + $0xc] sm:$0xf] %v1141
        %1158 = vst [vmem:[%s279 + $0x10] sm:$0xf] %v1142
        %1159 = vst [vmem:[%s279 + $0x14] sm:$0xf] %v1143
        %1160 = vst [vmem:[%s279 + $0x18] sm:$0xf] %v1144
        %1161 = vst [vmem:[%s279 + $0x1c] sm:$0xf] %v1145
        %1162 = vst [vmem:[%s279 + $0x20] sm:$0xf] %v1146
        %1163 = vst [vmem:[%s279 + $0x24] sm:$0xf] %v1147
        %1164 = vst [vmem:[%s279 + $0x28] sm:$0xf] %v1148
        %1165 = vst [vmem:[%s279 + $0x2c] sm:$0xf] %v1149
        %1166 = vst [vmem:[%s279 + $0x30] sm:$0xf] %v1150
        %1167 = vst [vmem:[%s279 + $0x34] sm:$0xf] %v1151
        %1168 = vst [vmem:[%s279 + $0x38] sm:$0xf] %v1152
        %1169 = vst [vmem:[%s279 + $0x3c] sm:$0xf] %v1153
      $region48: #{sage_forward.3} parent=39 // pred_fallthru
        _
      %s1170 = smul.u32 16, %s20
      %p1171 = scmp.lt.s32.totalorder %s1170, 31
      %s1172 = scalar_select %p1171, %s1170, 31
      %s1173 = smul.addr %s1172, 4
      %s1174 = scalar_lea.vmem %s5, %s1173
      // Predicated region
      $region49: #{sage_forward.3} parent=39 // pred_check
        %p1175 = pneg %p163
      $region50: #{sage_forward.3} parent=39 // pred_check_branch
        %1177 = sbr.rel (%p1175) target = $region52
      $region51: #{sage_forward.3} parent=39 // pred_region
        %s1178 = smul.u32 16, %s20
      $region52: #{sage_forward.3} parent=39 // pred_fallthru
        _
    $region40: #{sage_forward.3} parent=5 // pred_fallthru
      _
    %p1179 = scmp.le.s32.totalorder 2, %s11
    // Predicated region
    $region53: #{sage_forward.3} parent=5 // pred_check
      %p1180 = pneg %p1179
    $region54: #{sage_forward.3} parent=5 // pred_check_branch
      %1182 = sbr.rel (%p1180) target = $region56
    $region55: #{sage_forward.3} parent=5 // pred_region
      %s1183 = ssub.s32 %s11, 2
      // Predicated region
      $region57: #{sage_forward.3} parent=55 // pred_check
        %p1184 = pneg %p169
      $region58: #{sage_forward.3} parent=55 // pred_check_branch
        %1186 = sbr.rel (%p1184) target = $region60
      $region59: #{sage_forward.3} parent=55 // pred_region
        %s1187 = smul.u32 16, %s22
        %p1188 = scmp.lt.s32.totalorder %s1187, 31
        %s1189 = scalar_select %p1188, %s1187, 31
        %s1190 = smul.addr %s1189, 4
        %s1191 = scalar_lea.vmem %s5, %s1190
      $region60: #{sage_forward.3} parent=55 // pred_fallthru
        _
    $region56: #{sage_forward.3} parent=5 // pred_fallthru
      _
  $region6: #{sage_forward.3} parent=0 // loop_footer
    %s15 = sadd.s32 1, %s11
  $region7: #{sage_forward.3} parent=0 // loop_footer_branch
    %10 = sbr.rel target = $region3
  $region8: #{sage_forward.3} parent=0 // loop_exit
    _

</llo_original>
